<compile_context>
chip_gen: v5e
topology: v5e:2x2
jax: 0.10.0
libtpu: 0.0.40
codegen_flags: <defaults>
</compile_context>

<pallas_src>
import math

import jax
import jax.numpy as jnp
from jax.experimental import pallas as pl
from jax.experimental.pallas import tpu as pltpu


# --------------------------------------------------------------------------
# Helpers
# --------------------------------------------------------------------------
def _pick_tile(dim: int, cap: int = 256) -> int:
    """Largest multiple-of-8 divisor of `dim` that is <= cap (or dim itself if
    dim <= cap).  256 is safe on every generation; on v5e/v6e (128 MiB VMEM)
    512 is usually better for large S -- pass tq/tk explicitly there; keep 256
    on v7x (64 MiB/TC)."""
    if dim <= cap:
        return dim
    t = (cap // 8) * 8
    while t >= 8:
        if dim % t == 0:
            return t
        t -= 8
    raise NotImplementedError(
        f"no multiple-of-8 tile <= {cap} divides seq_len={dim}; pass tq/tk/tp "
        "explicitly (ragged tiles are not implemented)")


def _auto_vmem_limit(footprint_bytes: int) -> int:
    """Scoped-VMEM limit from the actual footprint, clamped to ~75% of the
    physical VMEM (leaves headroom; ~48 MiB on v7x, ~96 MiB on v5e/v6e)."""
    phys = 128 * 1024 * 1024
    try:
        info = pltpu.get_tpu_info()
        phys = int(getattr(info, "vmem_capacity_bytes", phys))
    except Exception:
        pass
    cap = (phys * 3) // 4
    want = int(footprint_bytes) + (8 << 20)
    return int(max(32 << 20, min(want, cap)))


def _weight_spec(shape, single_buffer: bool) -> pl.BlockSpec:
    """BlockSpec for a grid-invariant (resident) weight operand."""
    ndim = len(shape)
    idx = lambda *_: (0,) * ndim
    if single_buffer:
        # Constant index map -> never re-DMA'd; single-buffer it so the
        # pipeline does not double its VMEM footprint (matters on v7x).
        return pl.BlockSpec(shape, idx, pipeline_mode=pl.Buffered(1))
    return pl.BlockSpec(shape, idx)


# --------------------------------------------------------------------------
# Kernel 1: fused Q|K|V projection, head-major outputs
# --------------------------------------------------------------------------
def _make_qkv_proj_kernel(num_heads: int, head_dim: int, compute_dtype):
    nh, hd = num_heads, head_dim
    d_q = nh * hd

    def kernel(x_ref, w_ref, q_ref, k_ref, v_ref):
        x = x_ref[0].astype(compute_dtype)                       # (tp, H)
        qkv = jnp.dot(x, w_ref[...],
                      preferred_element_type=jnp.float32)        # (tp, 3*d_q)
        qkv = qkv.astype(compute_dtype)
        # Head-split stores: these ARE the output stores (same bytes as a
        # packed store, just strided) and run once per (batch, s-tile) --
        # not once per kv step as the old in-flash-kernel copies did.
        # TODO(synk): for hd < 128 pack two heads per lane row to avoid
        # half-empty lane stores.
        for h in range(nh):
            q_ref[0, h] = qkv[:, h * hd:(h + 1) * hd]
            k_ref[0, h] = qkv[:, d_q + h * hd:d_q + (h + 1) * hd]
            v_ref[0, h] = qkv[:, 2 * d_q + h * hd:2 * d_q + (h + 1) * hd]

    return kernel


# --------------------------------------------------------------------------
# Kernel 2: flash attention (online softmax) + fused output projection
# --------------------------------------------------------------------------
def _make_flash_attn_kernel(num_heads: int, head_dim: int, hidden_size: int,
                            compute_dtype):
    nh, hd = num_heads, head_dim

    def kernel(q_ref, k_ref, v_ref, wo_ref, o_ref, m_scr, l_scr, acc_scr):
        ki = pl.program_id(2)

        # ---- init running softmax state once per (batch, q-tile) -----------
        @pl.when(ki == 0)
        def _init():
            m_scr[...] = jnp.full_like(m_scr, -jnp.inf)
            l_scr[...] = jnp.zeros_like(l_scr)
            acc_scr[...] = jnp.zeros_like(acc_scr)

        # Head-major tiles straight from BlockSpec DMA -- no in-kernel copies.
        q = q_ref[0]                                   # (nh, tq, hd), scale folded
        k = k_ref[0]                                   # (nh, tk, hd)
        v = v_ref[0]                                   # (nh, tk, hd)

        s = jnp.einsum('hqd,hkd->hqk', q, k,
                       preferred_element_type=jnp.float32)        # (nh, tq, tk)
        m_prev = m_scr[...]
        m_new = jnp.maximum(m_prev, jnp.max(s, axis=-1, keepdims=True))
        alpha = jnp.exp(m_prev - m_new)
        # NOTE: this exp over (nh, tq, tk) is EUP work and can become the
        # binding unit now that the redundant projection FLOPs are gone --
        # if the EUP saturates, shrink tk (not tq).
        p = jnp.exp(s - m_new)
        l_scr[...] = alpha * l_scr[...] + jnp.sum(p, axis=-1, keepdims=True)
        acc_scr[...] = alpha * acc_scr[...] + jnp.einsum(
            'hqk,hkd->hqd', p.astype(compute_dtype), v,
            preferred_element_type=jnp.float32)
        m_scr[...] = m_new

        # ---- finalize: normalize + fused output projection ------------------
        @pl.when(ki == pl.num_programs(2) - 1)
        def _finalize():
            inv_l = pl.reciprocal(l_scr[...], approx=True)        # (nh, tq, 1)
            acc_n = (acc_scr[...] * inv_l).astype(compute_dtype)  # (nh, tq, hd)
            if hd % 128 == 0:
                # Lane-aligned heads: pack once as a value concat (no scratch
                # repacking stores) and run one deep (tq,d_q)x(d_q,H) matmul.
                packed = jnp.concatenate([acc_n[h] for h in range(nh)], axis=-1)
                out = jnp.dot(packed, wo_ref[...],
                              preferred_element_type=jnp.float32)
            else:
                # Sub-lane heads (hd < 128): skip lane repacking entirely and
                # accumulate per-head matmuls (contraction depth hd).
                # TODO(synk): pack 2 heads per lane row when hd == 64.
                out = jnp.zeros((acc_n.shape[1], hidden_size), jnp.float32)
                for h in range(nh):
                    out = out + jnp.dot(
                        acc_n[h], wo_ref[pl.ds(h * hd, hd), :],
                        preferred_element_type=jnp.float32)
            o_ref[0] = out.astype(o_ref.dtype)                     # lane-dense (tq, H)

    return kernel


# --------------------------------------------------------------------------
# Forward
# --------------------------------------------------------------------------
def _forward(x, wqkv_t, wo_t, num_heads, head_dim, tq, tk, tp,
             compute_dtype, out_dtype, single_buffer_weights):
    B, S, H = x.shape
    nh, hd = num_heads, head_dim
    d_q = nh * hd
    c_sz = jnp.dtype(compute_dtype).itemsize
    x_sz = jnp.dtype(x.dtype).itemsize
    o_sz = jnp.dtype(out_dtype).itemsize
    w_bufs = 1 if single_buffer_weights else 2

    # ---------------- stage 1: fused Q|K|V projection (once per s-tile) ------
    proj_kernel = _make_qkv_proj_kernel(nh, hd, compute_dtype)
    head_major = jax.ShapeDtypeStruct((B, nh, S, hd), compute_dtype)
    proj_fp = (2 * tp * H * x_sz                       # x tile, double buffered
               + w_bufs * H * 3 * d_q * c_sz           # fused Wq|Wk|Wv
               + 3 * 2 * tp * d_q * c_sz)              # q/k/v output tiles
    q, k, v = pl.pallas_call(
        proj_kernel,
        out_shape=(head_major, head_major, head_major),
        grid_spec=pltpu.PrefetchScalarGridSpec(
            num_scalar_prefetch=0,
            grid=(B, S // tp),
            in_specs=[
                pl.BlockSpec((1, tp, H), lambda b, si: (b, si, 0)),
                _weight_spec((H, 3 * d_q), single_buffer_weights),
            ],
            out_specs=(
                pl.BlockSpec((1, nh, tp, hd), lambda b, si: (b, 0, si, 0)),
                pl.BlockSpec((1, nh, tp, hd), lambda b, si: (b, 0, si, 0)),
                pl.BlockSpec((1, nh, tp, hd), lambda b, si: (b, 0, si, 0)),
            ),
        ),
        compiler_params=pltpu.CompilerParams(
            dimension_semantics=("parallel", "parallel"),
            vmem_limit_bytes=_auto_vmem_limit(proj_fp),
        ),
    )(x, wqkv_t)

    # ---------------- stage 2: flash attention + fused o_proj ----------------
    flash_kernel = _make_flash_attn_kernel(nh, hd, H, compute_dtype)
    flash_fp = (2 * tq * d_q * c_sz                    # Q tile
                + 2 * 2 * tk * d_q * c_sz              # K + V tiles
                + w_bufs * d_q * H * c_sz              # resident Wo
                + 2 * tq * H * o_sz                    # output tile
                + (2 * nh * tq + nh * tq * hd) * 4)    # f32 m/l/acc scratch
    return pl.pallas_call(
        flash_kernel,
        out_shape=jax.ShapeDtypeStruct((B, S, H), out_dtype),
        grid_spec=pltpu.PrefetchScalarGridSpec(
            num_scalar_prefetch=0,
            grid=(B, S // tq, S // tk),                # kv (reduction) axis last
            in_specs=[
                pl.BlockSpec((1, nh, tq, hd), lambda b, qi, ki: (b, 0, qi, 0)),
                pl.BlockSpec((1, nh, tk, hd), lambda b, qi, ki: (b, 0, ki, 0)),
                pl.BlockSpec((1, nh, tk, hd), lambda b, qi, ki: (b, 0, ki, 0)),
                _weight_spec((d_q, H), single_buffer_weights),
            ],
            out_specs=pl.BlockSpec((1, tq, H), lambda b, qi, ki: (b, qi, 0)),
            scratch_shapes=[
                pltpu.VMEM((nh, tq, 1), jnp.float32),   # running max
                pltpu.VMEM((nh, tq, 1), jnp.float32),   # running sum
                pltpu.VMEM((nh, tq, hd), jnp.float32),  # f32 accumulator
            ],
        ),
        compiler_params=pltpu.CompilerParams(
            dimension_semantics=("parallel", "parallel", "arbitrary"),
            vmem_limit_bytes=_auto_vmem_limit(flash_fp),
        ),
    )(q, k, v, wo_t)


def yica_attention_pallas(hidden_states, wq, wk, wv, wo,
                          num_heads: int, num_kv_heads: int, head_dim: int, *,
                          tq=None, tk=None, tp=None, use_bf16_compute=True):
    """Forward of YICAOptimizedAttention (mask=None, no KV cache).

    hidden_states: (B, S, H).  Weights in PyTorch nn.Linear (out, in) layout:
    wq/wk/wv: (nh*hd, H), wo: (H, nh*hd).  Returns the attention output only
    (the module also echoes past_key_value, which is pass-through).
    """
    B, S, H = hidden_states.shape
    if num_kv_heads != num_heads:
        # TODO(synk): GQA/MQA (num_kv_heads != num_heads) is not shape-valid in
        # the module's reference `_standard_attention`; not supported here.
        raise NotImplementedError("num_kv_heads must equal num_heads")
    assert H == num_heads * head_dim, "hidden_size must equal num_heads*head_dim"

    in_dtype = hidden_states.dtype
    # f32 matmuls are multi-pass on the MXU -> use bf16 operands for f32
    # callers; accumulation stays f32 (preferred_element_type) everywhere.
    compute_dtype = (jnp.bfloat16
                     if (use_bf16_compute and in_dtype == jnp.float32)
                     else in_dtype)

    scale = 1.0 / math.sqrt(head_dim)
    # One-time host-side weight prep: (out,in)->(in,out), fold 1/sqrt(hd) into
    # Wq, fuse Q|K|V into one wide weight for a single projection matmul.
    wqkv_t = jnp.concatenate([wq.T * scale, wk.T, wv.T],
                             axis=1).astype(compute_dtype)          # (H, 3*nh*hd)
    wo_t = wo.T.astype(compute_dtype)                               # (nh*hd, H)

    tp = tp if tp is not None else _pick_tile(S, 256)
    tq = tq if tq is not None else _pick_tile(S, 256)
    tk = tk if tk is not None else _pick_tile(S, 256)
    assert S % tp == 0 and S % tq == 0 and S % tk == 0

    args = (hidden_states, wqkv_t, wo_t, num_heads, head_dim, tq, tk, tp,
            compute_dtype, in_dtype)
    try:
        return _forward(*args, single_buffer_weights=True)
    except Exception:
        # Defensive fallback if this jax build rejects single-buffered
        # (pipeline_mode=pl.Buffered(1)) resident-weight specs; only costs
        # extra weight VMEM, never correctness.
        return _forward(*args, single_buffer_weights=False)


# --------------------------------------------------------------------------
# Pure-JAX reference (mirrors `_standard_attention`)
# --------------------------------------------------------------------------
def reference_attention(x, wq, wk, wv, wo, num_heads, head_dim):
    B, S, H = x.shape
    q = (x @ wq.T).reshape(B, S, num_heads, head_dim).transpose(0, 2, 1, 3)
    k = (x @ wk.T).reshape(B, S, num_heads, head_dim).transpose(0, 2, 1, 3)
    v = (x @ wv.T).reshape(B, S, num_heads, head_dim).transpose(0, 2, 1, 3)
    w = jnp.einsum("bhqd,bhkd->bhqk", q, k) / math.sqrt(head_dim)
    w = jax.nn.softmax(w, axis=-1)
    o = jnp.einsum("bhqk,bhkd->bhqd", w, v)
    o = o.transpose(0, 2, 1, 3).reshape(B, S, H)
    return o @ wo.T


if __name__ == "__main__":
    def run_case(name, batch, seq, num_heads, head_dim, tq, tk, tp, case_idx):
        hidden = num_heads * head_dim
        key = jax.random.fold_in(jax.random.PRNGKey(0), case_idx)
        kx, kq, kk, kv, ko = jax.random.split(key, 5)
        x = jax.random.normal(kx, (batch, seq, hidden), dtype=jnp.float32)
        wq = jax.random.normal(kq, (hidden, hidden), jnp.float32) * 0.05
        wk = jax.random.normal(kk, (hidden, hidden), jnp.float32) * 0.05
        wv = jax.random.normal(kv, (hidden, hidden), jnp.float32) * 0.05
        wo = jax.random.normal(ko, (hidden, hidden), jnp.float32) * 0.05

        out = yica_attention_pallas(x, wq, wk, wv, wo, num_heads, num_heads,
                                    head_dim, tq=tq, tk=tk, tp=tp)
        out = jax.block_until_ready(out)
        ref = reference_attention(x, wq, wk, wv, wo, num_heads, head_dim)
        err = float(jnp.max(jnp.abs(out - ref)))
        # Tolerance covers bf16 MXU operands (f32 accumulation) and the EUP
        # approximate reciprocal in the softmax normalization.
        assert jnp.allclose(out, ref, atol=3e-2, rtol=3e-2), \
            f"{name}: mismatch vs f32 reference (max abs err {err})"

    # Case 1: tiny module-consistent shapes; exercises the sub-lane head_dim
    # (<128) finalize path plus multiple q AND kv tiles (online-softmax
    # accumulation and the pl.when init/finalize phases).
    run_case("small", batch=2, seq=16, num_heads=4, head_dim=8,
             tq=8, tk=8, tp=8, case_idx=0)
    # Case 2: lane-aligned head_dim=128 (the module default head size) at
    # small seq; exercises the packed (concat + single deep matmul) o_proj path.
    run_case("hd128", batch=2, seq=32, num_heads=2, head_dim=128,
             tq=16, tk=16, tp=16, case_idx=1)

    # TODO(synk): optional attention_mask / KV-cache (past_key_value) paths not
    # implemented; forward default (mask=None, no cache) is reproduced exactly.
    print("KERNEL_OK")
</pallas_src>

<mosaic_0001>
module attributes {stable_mosaic.version = 11 : i64} {
  func.func @kernel(%arg0: i32, %arg1: i32, %arg2: memref<1x8x32xf32, #tpu.memory_space<vmem>>, %arg3: memref<32x96xbf16, #tpu.memory_space<vmem>>, %arg4: memref<1x4x8x8xbf16, #tpu.memory_space<vmem>>, %arg5: memref<1x4x8x8xbf16, #tpu.memory_space<vmem>>, %arg6: memref<1x4x8x8xbf16, #tpu.memory_space<vmem>>) attributes {dimension_semantics = [#tpu.dimension_semantics<parallel>, #tpu.dimension_semantics<parallel>], iteration_bounds = array<i64: 2, 2>, scalar_prefetch = 0 : i64, scratch_operands = 0 : i64, tpu.core_type = #tpu.core_type<tc>, window_params = [{transform_indices = @transform_0, window_bounds = array<i64: 1, 8, 32>}, {pipeline_mode = #tpu.pipeline_mode<synchronous>, transform_indices = @transform_1, window_bounds = array<i64: 32, 96>}, {transform_indices = @transform_2, window_bounds = array<i64: 1, 4, 8, 8>}, {transform_indices = @transform_3, window_bounds = array<i64: 1, 4, 8, 8>}, {transform_indices = @transform_4, window_bounds = array<i64: 1, 4, 8, 8>}]} {
    %c0 = arith.constant 0 : index
    %c0_0 = arith.constant 0 : index
    %c0_1 = arith.constant 0 : index
    %0 = vector.load %arg2[%c0, %c0_0, %c0_1] : memref<1x8x32xf32, #tpu.memory_space<vmem>>, vector<1x8x32xf32>
    %1 = vector.shape_cast %0 : vector<1x8x32xf32> to vector<8x32xf32>
    %2 = arith.truncf %1 : vector<8x32xf32> to vector<8x32xbf16>
    %c0_2 = arith.constant 0 : index
    %c0_3 = arith.constant 0 : index
    %3 = vector.load %arg3[%c0_2, %c0_3] : memref<32x96xbf16, #tpu.memory_space<vmem>>, vector<32x96xbf16>
    %cst = arith.constant dense<0.000000e+00> : vector<8x96xf32>
    %4 = tpu.matmul %2, %3, %cst {dimension_numbers = #tpu.dot_dimension_numbers<[1], [0], [0], [1], [0, 0, 1, 1], [], []>} : vector<8x32xbf16>, vector<32x96xbf16>, vector<8x96xf32> -> vector<8x96xf32>
    %5 = arith.truncf %4 : vector<8x96xf32> to vector<8x96xbf16>
    %6 = vector.extract_strided_slice %5 {offsets = [0, 0], sizes = [8, 8], strides = [1, 1]} : vector<8x96xbf16> to vector<8x8xbf16>
    %c0_4 = arith.constant 0 : index
    %c0_5 = arith.constant 0 : index
    %c0_6 = arith.constant 0 : index
    %c0_7 = arith.constant 0 : index
    %7 = vector.load %arg4[%c0_4, %c0_5, %c0_6, %c0_7] : memref<1x4x8x8xbf16, #tpu.memory_space<vmem>>, vector<1x1x8x8xbf16>
    %8 = vector.shape_cast %7 : vector<1x1x8x8xbf16> to vector<8x8xbf16>
    %9 = vector.shape_cast %6 : vector<8x8xbf16> to vector<1x1x8x8xbf16>
    tpu.vector_store %arg4[%c0_4, %c0_5, %c0_6, %c0_7], %9 {strides = array<i32>} : memref<1x4x8x8xbf16, #tpu.memory_space<vmem>>, vector<1x1x8x8xbf16>,
    %10 = vector.extract_strided_slice %5 {offsets = [0, 32], sizes = [8, 8], strides = [1, 1]} : vector<8x96xbf16> to vector<8x8xbf16>
    %c0_8 = arith.constant 0 : index
    %c0_9 = arith.constant 0 : index
    %c0_10 = arith.constant 0 : index
    %c0_11 = arith.constant 0 : index
    %11 = vector.load %arg5[%c0_8, %c0_9, %c0_10, %c0_11] : memref<1x4x8x8xbf16, #tpu.memory_space<vmem>>, vector<1x1x8x8xbf16>
    %12 = vector.shape_cast %11 : vector<1x1x8x8xbf16> to vector<8x8xbf16>
    %13 = vector.shape_cast %10 : vector<8x8xbf16> to vector<1x1x8x8xbf16>
    tpu.vector_store %arg5[%c0_8, %c0_9, %c0_10, %c0_11], %13 {strides = array<i32>} : memref<1x4x8x8xbf16, #tpu.memory_space<vmem>>, vector<1x1x8x8xbf16>,
    %14 = vector.extract_strided_slice %5 {offsets = [0, 64], sizes = [8, 8], strides = [1, 1]} : vector<8x96xbf16> to vector<8x8xbf16>
    %c0_12 = arith.constant 0 : index
    %c0_13 = arith.constant 0 : index
    %c0_14 = arith.constant 0 : index
    %c0_15 = arith.constant 0 : index
    %15 = vector.load %arg6[%c0_12, %c0_13, %c0_14, %c0_15] : memref<1x4x8x8xbf16, #tpu.memory_space<vmem>>, vector<1x1x8x8xbf16>
    %16 = vector.shape_cast %15 : vector<1x1x8x8xbf16> to vector<8x8xbf16>
    %17 = vector.shape_cast %14 : vector<8x8xbf16> to vector<1x1x8x8xbf16>
    tpu.vector_store %arg6[%c0_12, %c0_13, %c0_14, %c0_15], %17 {strides = array<i32>} : memref<1x4x8x8xbf16, #tpu.memory_space<vmem>>, vector<1x1x8x8xbf16>,
    %18 = vector.extract_strided_slice %5 {offsets = [0, 8], sizes = [8, 8], strides = [1, 1]} : vector<8x96xbf16> to vector<8x8xbf16>
    %c0_16 = arith.constant 0 : index
    %c1 = arith.constant 1 : index
    %c0_17 = arith.constant 0 : index
    %c0_18 = arith.constant 0 : index
    %19 = vector.load %arg4[%c0_16, %c1, %c0_17, %c0_18] : memref<1x4x8x8xbf16, #tpu.memory_space<vmem>>, vector<1x1x8x8xbf16>
    %20 = vector.shape_cast %19 : vector<1x1x8x8xbf16> to vector<8x8xbf16>
    %21 = vector.shape_cast %18 : vector<8x8xbf16> to vector<1x1x8x8xbf16>
    tpu.vector_store %arg4[%c0_16, %c1, %c0_17, %c0_18], %21 {strides = array<i32>} : memref<1x4x8x8xbf16, #tpu.memory_space<vmem>>, vector<1x1x8x8xbf16>,
    %22 = vector.extract_strided_slice %5 {offsets = [0, 40], sizes = [8, 8], strides = [1, 1]} : vector<8x96xbf16> to vector<8x8xbf16>
    %c0_19 = arith.constant 0 : index
    %c1_20 = arith.constant 1 : index
    %c0_21 = arith.constant 0 : index
    %c0_22 = arith.constant 0 : index
    %23 = vector.load %arg5[%c0_19, %c1_20, %c0_21, %c0_22] : memref<1x4x8x8xbf16, #tpu.memory_space<vmem>>, vector<1x1x8x8xbf16>
    %24 = vector.shape_cast %23 : vector<1x1x8x8xbf16> to vector<8x8xbf16>
    %25 = vector.shape_cast %22 : vector<8x8xbf16> to vector<1x1x8x8xbf16>
    tpu.vector_store %arg5[%c0_19, %c1_20, %c0_21, %c0_22], %25 {strides = array<i32>} : memref<1x4x8x8xbf16, #tpu.memory_space<vmem>>, vector<1x1x8x8xbf16>,
    %26 = vector.extract_strided_slice %5 {offsets = [0, 72], sizes = [8, 8], strides = [1, 1]} : vector<8x96xbf16> to vector<8x8xbf16>
    %c0_23 = arith.constant 0 : index
    %c1_24 = arith.constant 1 : index
    %c0_25 = arith.constant 0 : index
    %c0_26 = arith.constant 0 : index
    %27 = vector.load %arg6[%c0_23, %c1_24, %c0_25, %c0_26] : memref<1x4x8x8xbf16, #tpu.memory_space<vmem>>, vector<1x1x8x8xbf16>
    %28 = vector.shape_cast %27 : vector<1x1x8x8xbf16> to vector<8x8xbf16>
    %29 = vector.shape_cast %26 : vector<8x8xbf16> to vector<1x1x8x8xbf16>
    tpu.vector_store %arg6[%c0_23, %c1_24, %c0_25, %c0_26], %29 {strides = array<i32>} : memref<1x4x8x8xbf16, #tpu.memory_space<vmem>>, vector<1x1x8x8xbf16>,
    %30 = vector.extract_strided_slice %5 {offsets = [0, 16], sizes = [8, 8], strides = [1, 1]} : vector<8x96xbf16> to vector<8x8xbf16>
    %c0_27 = arith.constant 0 : index
    %c2 = arith.constant 2 : index
    %c0_28 = arith.constant 0 : index
    %c0_29 = arith.constant 0 : index
    %31 = vector.load %arg4[%c0_27, %c2, %c0_28, %c0_29] : memref<1x4x8x8xbf16, #tpu.memory_space<vmem>>, vector<1x1x8x8xbf16>
    %32 = vector.shape_cast %31 : vector<1x1x8x8xbf16> to vector<8x8xbf16>
    %33 = vector.shape_cast %30 : vector<8x8xbf16> to vector<1x1x8x8xbf16>
    tpu.vector_store %arg4[%c0_27, %c2, %c0_28, %c0_29], %33 {strides = array<i32>} : memref<1x4x8x8xbf16, #tpu.memory_space<vmem>>, vector<1x1x8x8xbf16>,
    %34 = vector.extract_strided_slice %5 {offsets = [0, 48], sizes = [8, 8], strides = [1, 1]} : vector<8x96xbf16> to vector<8x8xbf16>
    %c0_30 = arith.constant 0 : index
    %c2_31 = arith.constant 2 : index
    %c0_32 = arith.constant 0 : index
    %c0_33 = arith.constant 0 : index
    %35 = vector.load %arg5[%c0_30, %c2_31, %c0_32, %c0_33] : memref<1x4x8x8xbf16, #tpu.memory_space<vmem>>, vector<1x1x8x8xbf16>
    %36 = vector.shape_cast %35 : vector<1x1x8x8xbf16> to vector<8x8xbf16>
    %37 = vector.shape_cast %34 : vector<8x8xbf16> to vector<1x1x8x8xbf16>
    tpu.vector_store %arg5[%c0_30, %c2_31, %c0_32, %c0_33], %37 {strides = array<i32>} : memref<1x4x8x8xbf16, #tpu.memory_space<vmem>>, vector<1x1x8x8xbf16>,
    %38 = vector.extract_strided_slice %5 {offsets = [0, 80], sizes = [8, 8], strides = [1, 1]} : vector<8x96xbf16> to vector<8x8xbf16>
    %c0_34 = arith.constant 0 : index
    %c2_35 = arith.constant 2 : index
    %c0_36 = arith.constant 0 : index
    %c0_37 = arith.constant 0 : index
    %39 = vector.load %arg6[%c0_34, %c2_35, %c0_36, %c0_37] : memref<1x4x8x8xbf16, #tpu.memory_space<vmem>>, vector<1x1x8x8xbf16>
    %40 = vector.shape_cast %39 : vector<1x1x8x8xbf16> to vector<8x8xbf16>
    %41 = vector.shape_cast %38 : vector<8x8xbf16> to vector<1x1x8x8xbf16>
    tpu.vector_store %arg6[%c0_34, %c2_35, %c0_36, %c0_37], %41 {strides = array<i32>} : memref<1x4x8x8xbf16, #tpu.memory_space<vmem>>, vector<1x1x8x8xbf16>,
    %42 = vector.extract_strided_slice %5 {offsets = [0, 24], sizes = [8, 8], strides = [1, 1]} : vector<8x96xbf16> to vector<8x8xbf16>
    %c0_38 = arith.constant 0 : index
    %c3 = arith.constant 3 : index
    %c0_39 = arith.constant 0 : index
    %c0_40 = arith.constant 0 : index
    %43 = vector.load %arg4[%c0_38, %c3, %c0_39, %c0_40] : memref<1x4x8x8xbf16, #tpu.memory_space<vmem>>, vector<1x1x8x8xbf16>
    %44 = vector.shape_cast %43 : vector<1x1x8x8xbf16> to vector<8x8xbf16>
    %45 = vector.shape_cast %42 : vector<8x8xbf16> to vector<1x1x8x8xbf16>
    tpu.vector_store %arg4[%c0_38, %c3, %c0_39, %c0_40], %45 {strides = array<i32>} : memref<1x4x8x8xbf16, #tpu.memory_space<vmem>>, vector<1x1x8x8xbf16>,
    %46 = vector.extract_strided_slice %5 {offsets = [0, 56], sizes = [8, 8], strides = [1, 1]} : vector<8x96xbf16> to vector<8x8xbf16>
    %c0_41 = arith.constant 0 : index
    %c3_42 = arith.constant 3 : index
    %c0_43 = arith.constant 0 : index
    %c0_44 = arith.constant 0 : index
    %47 = vector.load %arg5[%c0_41, %c3_42, %c0_43, %c0_44] : memref<1x4x8x8xbf16, #tpu.memory_space<vmem>>, vector<1x1x8x8xbf16>
    %48 = vector.shape_cast %47 : vector<1x1x8x8xbf16> to vector<8x8xbf16>
    %49 = vector.shape_cast %46 : vector<8x8xbf16> to vector<1x1x8x8xbf16>
    tpu.vector_store %arg5[%c0_41, %c3_42, %c0_43, %c0_44], %49 {strides = array<i32>} : memref<1x4x8x8xbf16, #tpu.memory_space<vmem>>, vector<1x1x8x8xbf16>,
    %50 = vector.extract_strided_slice %5 {offsets = [0, 88], sizes = [8, 8], strides = [1, 1]} : vector<8x96xbf16> to vector<8x8xbf16>
    %c0_45 = arith.constant 0 : index
    %c3_46 = arith.constant 3 : index
    %c0_47 = arith.constant 0 : index
    %c0_48 = arith.constant 0 : index
    %51 = vector.load %arg6[%c0_45, %c3_46, %c0_47, %c0_48] : memref<1x4x8x8xbf16, #tpu.memory_space<vmem>>, vector<1x1x8x8xbf16>
    %52 = vector.shape_cast %51 : vector<1x1x8x8xbf16> to vector<8x8xbf16>
    %53 = vector.shape_cast %50 : vector<8x8xbf16> to vector<1x1x8x8xbf16>
    tpu.vector_store %arg6[%c0_45, %c3_46, %c0_47, %c0_48], %53 {strides = array<i32>} : memref<1x4x8x8xbf16, #tpu.memory_space<vmem>>, vector<1x1x8x8xbf16>,
    return
  }
  func.func @transform_0(%arg0: i32, %arg1: i32) -> (i32, i32, i32) {
    %c0_i32 = arith.constant 0 : i32
    %c0_i32_0 = arith.constant 0 : i32
    return %arg0, %arg1, %c0_i32 : i32, i32, i32
  }
  func.func @transform_1(%arg0: i32, %arg1: i32) -> (i32, i32) {
    %c0_i32 = arith.constant 0 : i32
    %c0_i32_0 = arith.constant 0 : i32
    %c0_i32_1 = arith.constant 0 : i32
    return %c0_i32, %c0_i32_0 : i32, i32
  }
  func.func @transform_2(%arg0: i32, %arg1: i32) -> (i32, i32, i32, i32) {
    %c0_i32 = arith.constant 0 : i32
    %c0_i32_0 = arith.constant 0 : i32
    %c0_i32_1 = arith.constant 0 : i32
    return %arg0, %c0_i32, %arg1, %c0_i32_0 : i32, i32, i32, i32
  }
  func.func @transform_3(%arg0: i32, %arg1: i32) -> (i32, i32, i32, i32) {
    %c0_i32 = arith.constant 0 : i32
    %c0_i32_0 = arith.constant 0 : i32
    %c0_i32_1 = arith.constant 0 : i32
    return %arg0, %c0_i32, %arg1, %c0_i32_0 : i32, i32, i32, i32
  }
  func.func @transform_4(%arg0: i32, %arg1: i32) -> (i32, i32, i32, i32) {
    %c0_i32 = arith.constant 0 : i32
    %c0_i32_0 = arith.constant 0 : i32
    %c0_i32_1 = arith.constant 0 : i32
    return %arg0, %c0_i32, %arg1, %c0_i32_0 : i32, i32, i32, i32
  }
}

module attributes {stable_mosaic.version = 11 : i64} {
  func.func @kernel(%arg0: i32, %arg1: i32, %arg2: memref<1x8x32xf32, #tpu.memory_space<vmem>>, %arg3: memref<32x96xbf16, #tpu.memory_space<vmem>>, %arg4: memref<1x4x8x8xbf16, #tpu.memory_space<vmem>>, %arg5: memref<1x4x8x8xbf16, #tpu.memory_space<vmem>>, %arg6: memref<1x4x8x8xbf16, #tpu.memory_space<vmem>>) attributes {dimension_semantics = [#tpu.dimension_semantics<parallel>, #tpu.dimension_semantics<parallel>], iteration_bounds = array<i64: 2, 2>, scalar_prefetch = 0 : i64, scratch_operands = 0 : i64, tpu.core_type = #tpu.core_type<tc>, window_params = [{transform_indices = @transform_0, window_bounds = array<i64: 1, 8, 32>}, {pipeline_mode = #tpu.pipeline_mode<synchronous>, transform_indices = @transform_1, window_bounds = array<i64: 32, 96>}, {transform_indices = @transform_2, window_bounds = array<i64: 1, 4, 8, 8>}, {transform_indices = @transform_3, window_bounds = array<i64: 1, 4, 8, 8>}, {transform_indices = @transform_4, window_bounds = array<i64: 1, 4, 8, 8>}]} {
    %c0 = arith.constant 0 : index
    %c0_0 = arith.constant 0 : index
    %c0_1 = arith.constant 0 : index
    %0 = vector.load %arg2[%c0, %c0_0, %c0_1] : memref<1x8x32xf32, #tpu.memory_space<vmem>>, vector<1x8x32xf32>
    %1 = vector.shape_cast %0 : vector<1x8x32xf32> to vector<8x32xf32>
    %2 = arith.truncf %1 : vector<8x32xf32> to vector<8x32xbf16>
    %c0_2 = arith.constant 0 : index
    %c0_3 = arith.constant 0 : index
    %3 = vector.load %arg3[%c0_2, %c0_3] : memref<32x96xbf16, #tpu.memory_space<vmem>>, vector<32x96xbf16>
    %cst = arith.constant dense<0.000000e+00> : vector<8x96xf32>
    %4 = tpu.matmul %2, %3, %cst {dimension_numbers = #tpu.dot_dimension_numbers<[1], [0], [0], [1], [0, 0, 1, 1], [], []>} : vector<8x32xbf16>, vector<32x96xbf16>, vector<8x96xf32> -> vector<8x96xf32>
    %5 = arith.truncf %4 : vector<8x96xf32> to vector<8x96xbf16>
    %6 = vector.extract_strided_slice %5 {offsets = [0, 0], sizes = [8, 8], strides = [1, 1]} : vector<8x96xbf16> to vector<8x8xbf16>
    %c0_4 = arith.constant 0 : index
    %c0_5 = arith.constant 0 : index
    %c0_6 = arith.constant 0 : index
    %c0_7 = arith.constant 0 : index
    %7 = vector.load %arg4[%c0_4, %c0_5, %c0_6, %c0_7] : memref<1x4x8x8xbf16, #tpu.memory_space<vmem>>, vector<1x1x8x8xbf16>
    %8 = vector.shape_cast %7 : vector<1x1x8x8xbf16> to vector<8x8xbf16>
    %9 = vector.shape_cast %6 : vector<8x8xbf16> to vector<1x1x8x8xbf16>
    tpu.vector_store %arg4[%c0_4, %c0_5, %c0_6, %c0_7], %9 {strides = array<i32>} : memref<1x4x8x8xbf16, #tpu.memory_space<vmem>>, vector<1x1x8x8xbf16>,
    %10 = vector.extract_strided_slice %5 {offsets = [0, 32], sizes = [8, 8], strides = [1, 1]} : vector<8x96xbf16> to vector<8x8xbf16>
    %c0_8 = arith.constant 0 : index
    %c0_9 = arith.constant 0 : index
    %c0_10 = arith.constant 0 : index
    %c0_11 = arith.constant 0 : index
    %11 = vector.load %arg5[%c0_8, %c0_9, %c0_10, %c0_11] : memref<1x4x8x8xbf16, #tpu.memory_space<vmem>>, vector<1x1x8x8xbf16>
    %12 = vector.shape_cast %11 : vector<1x1x8x8xbf16> to vector<8x8xbf16>
    %13 = vector.shape_cast %10 : vector<8x8xbf16> to vector<1x1x8x8xbf16>
    tpu.vector_store %arg5[%c0_8, %c0_9, %c0_10, %c0_11], %13 {strides = array<i32>} : memref<1x4x8x8xbf16, #tpu.memory_space<vmem>>, vector<1x1x8x8xbf16>,
    %14 = vector.extract_strided_slice %5 {offsets = [0, 64], sizes = [8, 8], strides = [1, 1]} : vector<8x96xbf16> to vector<8x8xbf16>
    %c0_12 = arith.constant 0 : index
    %c0_13 = arith.constant 0 : index
    %c0_14 = arith.constant 0 : index
    %c0_15 = arith.constant 0 : index
    %15 = vector.load %arg6[%c0_12, %c0_13, %c0_14, %c0_15] : memref<1x4x8x8xbf16, #tpu.memory_space<vmem>>, vector<1x1x8x8xbf16>
    %16 = vector.shape_cast %15 : vector<1x1x8x8xbf16> to vector<8x8xbf16>
    %17 = vector.shape_cast %14 : vector<8x8xbf16> to vector<1x1x8x8xbf16>
    tpu.vector_store %arg6[%c0_12, %c0_13, %c0_14, %c0_15], %17 {strides = array<i32>} : memref<1x4x8x8xbf16, #tpu.memory_space<vmem>>, vector<1x1x8x8xbf16>,
    %18 = vector.extract_strided_slice %5 {offsets = [0, 8], sizes = [8, 8], strides = [1, 1]} : vector<8x96xbf16> to vector<8x8xbf16>
    %c0_16 = arith.constant 0 : index
    %c1 = arith.constant 1 : index
    %c0_17 = arith.constant 0 : index
    %c0_18 = arith.constant 0 : index
    %19 = vector.load %arg4[%c0_16, %c1, %c0_17, %c0_18] : memref<1x4x8x8xbf16, #tpu.memory_space<vmem>>, vector<1x1x8x8xbf16>
    %20 = vector.shape_cast %19 : vector<1x1x8x8xbf16> to vector<8x8xbf16>
    %21 = vector.shape_cast %18 : vector<8x8xbf16> to vector<1x1x8x8xbf16>
    tpu.vector_store %arg4[%c0_16, %c1, %c0_17, %c0_18], %21 {strides = array<i32>} : memref<1x4x8x8xbf16, #tpu.memory_space<vmem>>, vector<1x1x8x8xbf16>,
    %22 = vector.extract_strided_slice %5 {offsets = [0, 40], sizes = [8, 8], strides = [1, 1]} : vector<8x96xbf16> to vector<8x8xbf16>
    %c0_19 = arith.constant 0 : index
    %c1_20 = arith.constant 1 : index
    %c0_21 = arith.constant 0 : index
    %c0_22 = arith.constant 0 : index
    %23 = vector.load %arg5[%c0_19, %c1_20, %c0_21, %c0_22] : memref<1x4x8x8xbf16, #tpu.memory_space<vmem>>, vector<1x1x8x8xbf16>
    %24 = vector.shape_cast %23 : vector<1x1x8x8xbf16> to vector<8x8xbf16>
    %25 = vector.shape_cast %22 : vector<8x8xbf16> to vector<1x1x8x8xbf16>
    tpu.vector_store %arg5[%c0_19, %c1_20, %c0_21, %c0_22], %25 {strides = array<i32>} : memref<1x4x8x8xbf16, #tpu.memory_space<vmem>>, vector<1x1x8x8xbf16>,
    %26 = vector.extract_strided_slice %5 {offsets = [0, 72], sizes = [8, 8], strides = [1, 1]} : vector<8x96xbf16> to vector<8x8xbf16>
    %c0_23 = arith.constant 0 : index
    %c1_24 = arith.constant 1 : index
    %c0_25 = arith.constant 0 : index
    %c0_26 = arith.constant 0 : index
    %27 = vector.load %arg6[%c0_23, %c1_24, %c0_25, %c0_26] : memref<1x4x8x8xbf16, #tpu.memory_space<vmem>>, vector<1x1x8x8xbf16>
    %28 = vector.shape_cast %27 : vector<1x1x8x8xbf16> to vector<8x8xbf16>
    %29 = vector.shape_cast %26 : vector<8x8xbf16> to vector<1x1x8x8xbf16>
    tpu.vector_store %arg6[%c0_23, %c1_24, %c0_25, %c0_26], %29 {strides = array<i32>} : memref<1x4x8x8xbf16, #tpu.memory_space<vmem>>, vector<1x1x8x8xbf16>,
    %30 = vector.extract_strided_slice %5 {offsets = [0, 16], sizes = [8, 8], strides = [1, 1]} : vector<8x96xbf16> to vector<8x8xbf16>
    %c0_27 = arith.constant 0 : index
    %c2 = arith.constant 2 : index
    %c0_28 = arith.constant 0 : index
    %c0_29 = arith.constant 0 : index
    %31 = vector.load %arg4[%c0_27, %c2, %c0_28, %c0_29] : memref<1x4x8x8xbf16, #tpu.memory_space<vmem>>, vector<1x1x8x8xbf16>
    %32 = vector.shape_cast %31 : vector<1x1x8x8xbf16> to vector<8x8xbf16>
    %33 = vector.shape_cast %30 : vector<8x8xbf16> to vector<1x1x8x8xbf16>
    tpu.vector_store %arg4[%c0_27, %c2, %c0_28, %c0_29], %33 {strides = array<i32>} : memref<1x4x8x8xbf16, #tpu.memory_space<vmem>>, vector<1x1x8x8xbf16>,
    %34 = vector.extract_strided_slice %5 {offsets = [0, 48], sizes = [8, 8], strides = [1, 1]} : vector<8x96xbf16> to vector<8x8xbf16>
    %c0_30 = arith.constant 0 : index
    %c2_31 = arith.constant 2 : index
    %c0_32 = arith.constant 0 : index
    %c0_33 = arith.constant 0 : index
    %35 = vector.load %arg5[%c0_30, %c2_31, %c0_32, %c0_33] : memref<1x4x8x8xbf16, #tpu.memory_space<vmem>>, vector<1x1x8x8xbf16>
    %36 = vector.shape_cast %35 : vector<1x1x8x8xbf16> to vector<8x8xbf16>
    %37 = vector.shape_cast %34 : vector<8x8xbf16> to vector<1x1x8x8xbf16>
    tpu.vector_store %arg5[%c0_30, %c2_31, %c0_32, %c0_33], %37 {strides = array<i32>} : memref<1x4x8x8xbf16, #tpu.memory_space<vmem>>, vector<1x1x8x8xbf16>,
    %38 = vector.extract_strided_slice %5 {offsets = [0, 80], sizes = [8, 8], strides = [1, 1]} : vector<8x96xbf16> to vector<8x8xbf16>
    %c0_34 = arith.constant 0 : index
    %c2_35 = arith.constant 2 : index
    %c0_36 = arith.constant 0 : index
    %c0_37 = arith.constant 0 : index
    %39 = vector.load %arg6[%c0_34, %c2_35, %c0_36, %c0_37] : memref<1x4x8x8xbf16, #tpu.memory_space<vmem>>, vector<1x1x8x8xbf16>
    %40 = vector.shape_cast %39 : vector<1x1x8x8xbf16> to vector<8x8xbf16>
    %41 = vector.shape_cast %38 : vector<8x8xbf16> to vector<1x1x8x8xbf16>
    tpu.vector_store %arg6[%c0_34, %c2_35, %c0_36, %c0_37], %41 {strides = array<i32>} : memref<1x4x8x8xbf16, #tpu.memory_space<vmem>>, vector<1x1x8x8xbf16>,
    %42 = vector.extract_strided_slice %5 {offsets = [0, 24], sizes = [8, 8], strides = [1, 1]} : vector<8x96xbf16> to vector<8x8xbf16>
    %c0_38 = arith.constant 0 : index
    %c3 = arith.constant 3 : index
    %c0_39 = arith.constant 0 : index
    %c0_40 = arith.constant 0 : index
    %43 = vector.load %arg4[%c0_38, %c3, %c0_39, %c0_40] : memref<1x4x8x8xbf16, #tpu.memory_space<vmem>>, vector<1x1x8x8xbf16>
    %44 = vector.shape_cast %43 : vector<1x1x8x8xbf16> to vector<8x8xbf16>
    %45 = vector.shape_cast %42 : vector<8x8xbf16> to vector<1x1x8x8xbf16>
    tpu.vector_store %arg4[%c0_38, %c3, %c0_39, %c0_40], %45 {strides = array<i32>} : memref<1x4x8x8xbf16, #tpu.memory_space<vmem>>, vector<1x1x8x8xbf16>,
    %46 = vector.extract_strided_slice %5 {offsets = [0, 56], sizes = [8, 8], strides = [1, 1]} : vector<8x96xbf16> to vector<8x8xbf16>
    %c0_41 = arith.constant 0 : index
    %c3_42 = arith.constant 3 : index
    %c0_43 = arith.constant 0 : index
    %c0_44 = arith.constant 0 : index
    %47 = vector.load %arg5[%c0_41, %c3_42, %c0_43, %c0_44] : memref<1x4x8x8xbf16, #tpu.memory_space<vmem>>, vector<1x1x8x8xbf16>
    %48 = vector.shape_cast %47 : vector<1x1x8x8xbf16> to vector<8x8xbf16>
    %49 = vector.shape_cast %46 : vector<8x8xbf16> to vector<1x1x8x8xbf16>
    tpu.vector_store %arg5[%c0_41, %c3_42, %c0_43, %c0_44], %49 {strides = array<i32>} : memref<1x4x8x8xbf16, #tpu.memory_space<vmem>>, vector<1x1x8x8xbf16>,
    %50 = vector.extract_strided_slice %5 {offsets = [0, 88], sizes = [8, 8], strides = [1, 1]} : vector<8x96xbf16> to vector<8x8xbf16>
    %c0_45 = arith.constant 0 : index
    %c3_46 = arith.constant 3 : index
    %c0_47 = arith.constant 0 : index
    %c0_48 = arith.constant 0 : index
    %51 = vector.load %arg6[%c0_45, %c3_46, %c0_47, %c0_48] : memref<1x4x8x8xbf16, #tpu.memory_space<vmem>>, vector<1x1x8x8xbf16>
    %52 = vector.shape_cast %51 : vector<1x1x8x8xbf16> to vector<8x8xbf16>
    %53 = vector.shape_cast %50 : vector<8x8xbf16> to vector<1x1x8x8xbf16>
    tpu.vector_store %arg6[%c0_45, %c3_46, %c0_47, %c0_48], %53 {strides = array<i32>} : memref<1x4x8x8xbf16, #tpu.memory_space<vmem>>, vector<1x1x8x8xbf16>,
    return
  }
  func.func @transform_0(%arg0: i32, %arg1: i32) -> (i32, i32, i32) {
    %c0_i32 = arith.constant 0 : i32
    %c0_i32_0 = arith.constant 0 : i32
    return %arg0, %arg1, %c0_i32 : i32, i32, i32
  }
  func.func @transform_1(%arg0: i32, %arg1: i32) -> (i32, i32) {
    %c0_i32 = arith.constant 0 : i32
    %c0_i32_0 = arith.constant 0 : i32
    %c0_i32_1 = arith.constant 0 : i32
    return %c0_i32, %c0_i32_0 : i32, i32
  }
  func.func @transform_2(%arg0: i32, %arg1: i32) -> (i32, i32, i32, i32) {
    %c0_i32 = arith.constant 0 : i32
    %c0_i32_0 = arith.constant 0 : i32
    %c0_i32_1 = arith.constant 0 : i32
    return %arg0, %c0_i32, %arg1, %c0_i32_0 : i32, i32, i32, i32
  }
  func.func @transform_3(%arg0: i32, %arg1: i32) -> (i32, i32, i32, i32) {
    %c0_i32 = arith.constant 0 : i32
    %c0_i32_0 = arith.constant 0 : i32
    %c0_i32_1 = arith.constant 0 : i32
    return %arg0, %c0_i32, %arg1, %c0_i32_0 : i32, i32, i32, i32
  }
  func.func @transform_4(%arg0: i32, %arg1: i32) -> (i32, i32, i32, i32) {
    %c0_i32 = arith.constant 0 : i32
    %c0_i32_0 = arith.constant 0 : i32
    %c0_i32_1 = arith.constant 0 : i32
    return %arg0, %c0_i32, %arg1, %c0_i32_0 : i32, i32, i32, i32
  }
}

</mosaic_0001>

<llo_original>
// kernel: tpu_custom_call.1
$region0: #{tpu_custom_call.1}
  #allocation0 [shape = 'u32[]', space=smem, size = 0x4, offset = 0x4, fixed_abs, tag = 'smem constant byte address 0x4 - core index']
  #allocation1 [shape = 'u32[72,128]{1,0:T(1,128)}', space=vmem, size = 0x9000, scoped, tag = 'internal scratch']
  %s0 = inlined_call_operand.hbm [shape: f32[2,16,32], index: 0, kind: input, shape index: {}]
  %s1 = inlined_call_operand.hbm [shape: bf16[32,96], index: 1, kind: input, shape index: {}]
  %s2 = inlined_call_operand.vmem [shape: bf16[2,4,16,8], index: 2, kind: output, shape index: {0}]
  %s3 = inlined_call_operand.vmem [shape: bf16[2,4,16,8], index: 3, kind: output, shape index: {1}]
  %s4 = inlined_call_operand.vmem [shape: bf16[2,4,16,8], index: 4, kind: output, shape index: {2}]
  %5 = xla_tuple %s2, %s3, %s4
  %s6 = sld [smem:[#allocation0]]
  $region176: #{tpu_custom_call.1} parent=0
    _
  %s8 = ssub.s32 1, %s6
  %s9 = scalar_select 0, %s8, %s6
  $region1: #{tpu_custom_call.1} parent=0
    #allocation2 [shape = 'u8[8192]{0}', space=vmem, size = 0x2000, scoped, tag = 'input window, operand 0']
    #allocation3 [shape = 's32[2]{0}', space=sflag, size = 0x8, scoped, tag = 'scoped memory for tpu_custom_call.1']
    #allocation4 [shape = 'u8[8192]{0}', space=vmem, size = 0x2000, scoped, tag = 'input window, operand 1, single buffered']
    #allocation5 [shape = 's32[1]{0}', space=sflag, size = 0x4, scoped, tag = 'scoped memory for tpu_custom_call.1']
    #allocation6 [shape = 'u8[16384]{0}', space=vmem, size = 0x4000, scoped, tag = 'output window, operand 0']
    #allocation7 [shape = 'u8[16384]{0}', space=vmem, size = 0x4000, scoped, tag = 'output window, operand 1']
    #allocation8 [shape = 'u8[16384]{0}', space=vmem, size = 0x4000, scoped, tag = 'output window, operand 2']
    %10 = vsyncpa [#allocation3], 0
    %s11 = scalar_lea.sflag [#allocation3], 1
    %12 = vsyncpa %s11, 0
    %13 = vsyncpa [#allocation5], 0
    loop: start=0, step=1, limit=6
    $region2: #{tpu_custom_call.1} parent=1 // loop_pre_header
      _
    $region3: #{tpu_custom_call.1} parent=1 // loop_header
      %s15 = sphi 0, %s19
      %p16 = scmp.ge.s32.totalorder %s15, 6
      %s22 = sphi 0, %s34
      %s23 = sphi 0, %s30
      %s24 = sphi 0, %s22
      %s25 = sphi 0, %s23
      %s26 = sphi 0, %s24
      %s27 = sphi 0, %s25
      %s39 = sphi 0, %s41
      %s42 = sphi 0, %s39
      %s43 = sphi 0, %s42
      %s59 = sphi 0, %s43
      %s63 = sphi 0, %s63
      %s65 = sphi 0, %s63
      %s66 = sphi 0, %s65
      %s80 = sphi 0, %s66
      %s88 = sphi 0, %s90
      %s91 = sphi 0, %s88
      %s92 = sphi 0, %s91
      %s108 = sphi 0, %s92
      %s116 = sphi 0, %s118
      %s119 = sphi 0, %s116
      %s120 = sphi 0, %s119
      %s136 = sphi 0, %s120
      %s144 = sphi 0, %s146
      %s147 = sphi 0, %s144
      %s148 = sphi 0, %s147
      %s164 = sphi 0, %s148
    $region4: #{tpu_custom_call.1} parent=1 // loop_header_branch
      %18 = sbr.rel (%p16) target = $region8
    $region5: #{tpu_custom_call.1} parent=1 // loop_body
      %s20 = ssub.s32 %s15, 1
      %s21 = ssub.s32 %s15, 2
      %s28 = sadd.s32 1, %s23
      %p29 = scmp.ge.s32.totalorder %s28, 2
      %s30 = scalar_select %p29, 0, %s28
      %s31 = sadd.s32 1, %s22
      %s32 = scalar_select %p29, %s31, %s22
      %p33 = scmp.ge.s32.totalorder %s32, 2
      %s34 = scalar_select %p33, 0, %s32
      %s35 = ssub.s32 %s22, %s34
      %s36 = ssub.s32 %s23, %s30
      %s37 = sor.u32 %s35, %s36
      %p38 = scmp.eq.s32.totalorder %s37, 0
      %s40 = sadd.s32 %s39, 1
      %s41 = scalar_select %p38, %s39, %s40
      %p44 = pneg %p38
      %p45 = scmp.eq.s32.totalorder %s15, 3
      %p46 = por %p44, %p45
      %p47 = scmp.ne.s32.totalorder %s39, %s42
      %p48 = scmp.eq.s32.totalorder %s15, 0
      %p49 = por %p47, %p48
      %p50 = scmp.ne.s32.totalorder %s39, %s42
      %p51 = scmp.eq.s32.totalorder %s20, 3
      %p52 = por %p50, %p51
      %p53 = scmp.ne.s32.totalorder %s42, %s43
      %p54 = scmp.eq.s32.totalorder %s20, 0
      %p55 = por %p53, %p54
      %p56 = scmp.ne.s32.totalorder %s42, %s43
      %p57 = scmp.eq.s32.totalorder %s21, 3
      %p58 = por %p56, %p57
      %p60 = scmp.ne.s32.totalorder %s43, %s59
      %p61 = scmp.eq.s32.totalorder %s21, 0
      %p62 = por %p60, %p61
      %s64 = sadd.s32 %s63, 1
      %p67 = scmp.eq.s32.totalorder %s15, 3
      %p68 = scmp.ne.s32.totalorder %s63, %s65
      %p69 = scmp.eq.s32.totalorder %s15, 0
      %p70 = por %p68, %p69
      %p71 = scmp.ne.s32.totalorder %s63, %s65
      %p72 = scmp.eq.s32.totalorder %s20, 3
      %p73 = por %p71, %p72
      %p74 = scmp.ne.s32.totalorder %s65, %s66
      %p75 = scmp.eq.s32.totalorder %s20, 0
      %p76 = por %p74, %p75
      %p77 = scmp.ne.s32.totalorder %s65, %s66
      %p78 = scmp.eq.s32.totalorder %s21, 3
      %p79 = por %p77, %p78
      %p81 = scmp.ne.s32.totalorder %s66, %s80
      %p82 = scmp.eq.s32.totalorder %s21, 0
      %p83 = por %p81, %p82
      %s84 = ssub.s32 %s22, %s34
      %s85 = ssub.s32 %s23, %s30
      %s86 = sor.u32 %s84, %s85
      %p87 = scmp.eq.s32.totalorder %s86, 0
      %s89 = sadd.s32 %s88, 1
      %s90 = scalar_select %p87, %s88, %s89
      %p93 = pneg %p87
      %p94 = scmp.eq.s32.totalorder %s15, 3
      %p95 = por %p93, %p94
      %p96 = scmp.ne.s32.totalorder %s88, %s91
      %p97 = scmp.eq.s32.totalorder %s15, 0
      %p98 = por %p96, %p97
      %p99 = scmp.ne.s32.totalorder %s88, %s91
      %p100 = scmp.eq.s32.totalorder %s20, 3
      %p101 = por %p99, %p100
      %p102 = scmp.ne.s32.totalorder %s91, %s92
      %p103 = scmp.eq.s32.totalorder %s20, 0
      %p104 = por %p102, %p103
      %p105 = scmp.ne.s32.totalorder %s91, %s92
      %p106 = scmp.eq.s32.totalorder %s21, 3
      %p107 = por %p105, %p106
      %p109 = scmp.ne.s32.totalorder %s92, %s108
      %p110 = scmp.eq.s32.totalorder %s21, 0
      %p111 = por %p109, %p110
      %s112 = ssub.s32 %s22, %s34
      %s113 = ssub.s32 %s23, %s30
      %s114 = sor.u32 %s112, %s113
      %p115 = scmp.eq.s32.totalorder %s114, 0
      %s117 = sadd.s32 %s116, 1
      %s118 = scalar_select %p115, %s116, %s117
      %p121 = pneg %p115
      %p122 = scmp.eq.s32.totalorder %s15, 3
      %p123 = por %p121, %p122
      %p124 = scmp.ne.s32.totalorder %s116, %s119
      %p125 = scmp.eq.s32.totalorder %s15, 0
      %p126 = por %p124, %p125
      %p127 = scmp.ne.s32.totalorder %s116, %s119
      %p128 = scmp.eq.s32.totalorder %s20, 3
      %p129 = por %p127, %p128
      %p130 = scmp.ne.s32.totalorder %s119, %s120
      %p131 = scmp.eq.s32.totalorder %s20, 0
      %p132 = por %p130, %p131
      %p133 = scmp.ne.s32.totalorder %s119, %s120
      %p134 = scmp.eq.s32.totalorder %s21, 3
      %p135 = por %p133, %p134
      %p137 = scmp.ne.s32.totalorder %s120, %s136
      %p138 = scmp.eq.s32.totalorder %s21, 0
      %p139 = por %p137, %p138
      %s140 = ssub.s32 %s22, %s34
      %s141 = ssub.s32 %s23, %s30
      %s142 = sor.u32 %s140, %s141
      %p143 = scmp.eq.s32.totalorder %s142, 0
      %s145 = sadd.s32 %s144, 1
      %s146 = scalar_select %p143, %s144, %s145
      %p149 = pneg %p143
      %p150 = scmp.eq.s32.totalorder %s15, 3
      %p151 = por %p149, %p150
      %p152 = scmp.ne.s32.totalorder %s144, %s147
      %p153 = scmp.eq.s32.totalorder %s15, 0
      %p154 = por %p152, %p153
      %p155 = scmp.ne.s32.totalorder %s144, %s147
      %p156 = scmp.eq.s32.totalorder %s20, 3
      %p157 = por %p155, %p156
      %p158 = scmp.ne.s32.totalorder %s147, %s148
      %p159 = scmp.eq.s32.totalorder %s20, 0
      %p160 = por %p158, %p159
      %p161 = scmp.ne.s32.totalorder %s147, %s148
      %p162 = scmp.eq.s32.totalorder %s21, 3
      %p163 = por %p161, %p162
      %p165 = scmp.ne.s32.totalorder %s148, %s164
      %p166 = scmp.eq.s32.totalorder %s21, 0
      %p167 = por %p165, %p166
      %p168 = scmp.le.s32.totalorder 1, %s15
      %p169 = scmp.lt.s32.totalorder %s15, 5
      %p170 = pnand %p168, %p169
      %p171 = pneg %p170
      // Predicated region
      $region9: #{tpu_custom_call.1} parent=5 // pred_check
        _
      $region10: #{tpu_custom_call.1} parent=5 // pred_check_branch
        %173 = sbr.rel (%p170) target = $region12
      $region11: #{tpu_custom_call.1} parent=5 // pred_region
        %s174 = ssub.s32 %s15, 1
        // Predicated region
        $region13: #{tpu_custom_call.1} parent=11 // pred_check
          %p175 = pneg %p76
        $region14: #{tpu_custom_call.1} parent=11 // pred_check_branch
          %177 = sbr.rel (%p175) target = $region16
        $region15: #{tpu_custom_call.1} parent=11 // pred_region
          %179 = vsyncadd [#allocation5], 0
          %s180 = sshll.u32 %s1, 4
          %s181 = int_to_ptr.hbm [resolvable:$true] %s180
          %s182 = sshll.u32 [#allocation4], 4
          %s183 = int_to_ptr.vmem [resolvable:$true] %s182
          %188 = dma.hbm_to_vmem [thread:$0]  %s181, 256, %s183, [#allocation5], 64, 64, 4
        $region16: #{tpu_custom_call.1} parent=11 // pred_fallthru
          _
      $region12: #{tpu_custom_call.1} parent=5 // pred_fallthru
        _
      %p189 = scmp.lt.s32.totalorder %s15, 4
      // Predicated region
      $region17: #{tpu_custom_call.1} parent=5 // pred_check
        %p190 = pneg %p189
      $region18: #{tpu_custom_call.1} parent=5 // pred_check_branch
        %192 = sbr.rel (%p190) target = $region20
      $region19: #{tpu_custom_call.1} parent=5 // pred_region
        // Predicated region
        $region21: #{tpu_custom_call.1} parent=19 // pred_check
          %p193 = pneg %p49
        $region22: #{tpu_custom_call.1} parent=19 // pred_check_branch
          %195 = sbr.rel (%p193) target = $region24
        $region23: #{tpu_custom_call.1} parent=19 // pred_region
          %s196 = sand.u32 %s39, 1
          %s197 = scalar_lea.sflag [#allocation3], %s196
          %s198 = sand.u32 %s39, 1
          %s199 = smul.addr %s198, 8
          %s200 = scalar_lea.vmem [#allocation2], %s199
          %202 = vsyncadd %s197, 0
          %s203 = smul.addr %s22, 2
          %s204 = sadd.s32 %s23, %s203
          %s205 = smul.addr %s204, 8
          %s206 = scalar_lea.hbm %s0, %s205
          %s208 = sshll.u32 %s206, 4
          %s209 = int_to_ptr.hbm [resolvable:$true] %s208
          %s210 = sshll.u32 %s200, 4
          %s211 = int_to_ptr.vmem [resolvable:$true] %s210
          %213 = dma.hbm_to_vmem [thread:$0]  %s209, 128, %s211, %s197
        $region24: #{tpu_custom_call.1} parent=19 // pred_fallthru
          _
      $region20: #{tpu_custom_call.1} parent=5 // pred_fallthru
        _
      %p214 = scmp.le.s32.totalorder 1, %s15
      %p215 = scmp.lt.s32.totalorder %s15, 5
      %p216 = pnand %p214, %p215
      %p217 = pneg %p216
      // Predicated region
      $region25: #{tpu_custom_call.1} parent=5 // pred_check
        _
      $region26: #{tpu_custom_call.1} parent=5 // pred_check_branch
        %219 = sbr.rel (%p216) target = $region28
      $region27: #{tpu_custom_call.1} parent=5 // pred_region
        %s220 = ssub.s32 %s15, 1
        %s221 = sand.u32 %s42, 1
        %s222 = scalar_lea.sflag [#allocation3], %s221
        %s223 = sand.u32 %s42, 1
        %s224 = smul.addr %s223, 8
        %s225 = scalar_lea.vmem [#allocation2], %s224
        // Predicated region
        $region29: #{tpu_custom_call.1} parent=27 // pred_check
          %p226 = pneg %p55
        $region30: #{tpu_custom_call.1} parent=27 // pred_check_branch
          %228 = sbr.rel (%p226) target = $region32
        $region31: #{tpu_custom_call.1} parent=27 // pred_region
          %230 = dma.done %s222, 128
        $region32: #{tpu_custom_call.1} parent=27 // pred_fallthru
          _
        // Predicated region
        $region33: #{tpu_custom_call.1} parent=27 // pred_check
          %p231 = pneg %p76
        $region34: #{tpu_custom_call.1} parent=27 // pred_check_branch
          %233 = sbr.rel (%p231) target = $region36
        $region35: #{tpu_custom_call.1} parent=27 // pred_region
          %235 = dma.done [#allocation5], 256
        $region36: #{tpu_custom_call.1} parent=27 // pred_fallthru
          _
        %s236 = sand.u32 %s42, 1
        %s237 = scalar_lea.sflag [#allocation3], %s236
        %s238 = sand.u32 %s42, 1
        %s239 = smul.addr %s238, 8
        %s240 = scalar_lea.vmem [#allocation2], %s239
        %p241 = pneg %p55
        %p242 = pneg %p52
        %p243 = pneg %p76
        %p244 = pneg %p73
        %p245 = pneg %p104
        %p246 = pneg %p101
        %s247 = sand.u32 %s91, 1
        %s248 = sand.u32 %s91, 1
        %s249 = smul.addr %s248, 16
        %s250 = scalar_lea.vmem [#allocation6], %s249
        %p251 = pneg %p132
        %p252 = pneg %p129
        %s253 = sand.u32 %s119, 1
        %s254 = sand.u32 %s119, 1
        %s255 = smul.addr %s254, 16
        %s256 = scalar_lea.vmem [#allocation7], %s255
        %p257 = pneg %p160
        %p258 = pneg %p157
        %s259 = sand.u32 %s147, 1
        %s260 = sand.u32 %s147, 1
        %s261 = smul.addr %s260, 16
        %s262 = scalar_lea.vmem [#allocation8], %s261
        %v264 = vld [vmem:[%s225] sm:$0xff]
        %v265 = vpack.c.bf16 %v264, %v264
        %v266 = vld [vmem:[#allocation4] sm:$0xf]
        %v267 = vld [vmem:[#allocation4 + $0x4] sm:$0xf]
        %v268 = vld [vmem:[#allocation4 + $0x8] sm:$0xf]
        %v269 = vld [vmem:[#allocation4 + $0xc] sm:$0xf]
        %v274 = vunpack.c.l.b16 %v266
        %v275 = vunpack.c.l.b16 %v267
        %v276 = vunpack.c.l.b16 %v268
        %v277 = vunpack.c.l.b16 %v269
        %v278 = vpack.c.b16 %v275, %v274
        %v279 = vpack.c.b16 %v277, %v276
        %vm282 = vcmask 261120
        %v284 = vsel %vm282, %v265, 0
        %286 = vmatpush.bf16.msra.mxu0 0
        %287 = vmatpush.bf16.msra.mxu0 0
        %288 = vmatpush.bf16.msra.mxu0 0
        %289 = vmatpush.bf16.msra.mxu0 0
        %290 = vmatpush.bf16.msra.mxu0 0
        %291 = vmatpush.bf16.msra.mxu0 0
        %292 = vmatpush.bf16.msra.mxu0 %v279
        %293 = vmatpush.bf16.msra.mxu0 %v278
        %294 = vmatmul.bf16.gmra.mxu0 %v284
        %v295 = vpop.f32.mrf.mxu0
        %v296 = vadd.f32 0.0, %v295
        %v297 = vpop.f32.mrf.mxu0
        %298 = vdwg.mxu0
        %v299 = vpack.c.bf16 %v296, %v296
        %vm300 = vcmask 60416
        %301 = vst.msk [vmem:[%s250] sm:$0xf] %vm300, %v299
        %303 = vrot.lane.b32.xlu0 %v299, 96
        %v304 = vpop.permute.xlu0 %303
        %306 = vst.msk [vmem:[%s256] sm:$0xf] %vm300, %v304
        %307 = vrot.lane.b32.xlu0 %v299, 64
        %v308 = vpop.permute.xlu0 %307
        %310 = vst.msk [vmem:[%s262] sm:$0xf] %vm300, %v308
        %311 = vrot.lane.b32.xlu0 %v299, 120
        %v312 = vpop.permute.xlu0 %311
        %s314 = scalar_lea.vmem %s250, 4 [#allocation6]
        %315 = vst.msk [vmem:[%s314] sm:$0xf] %vm300, %v312
        %316 = vrot.lane.b32.xlu0 %v299, 88
        %v317 = vpop.permute.xlu0 %316
        %s319 = scalar_lea.vmem %s256, 4 [#allocation7]
        %320 = vst.msk [vmem:[%s319] sm:$0xf] %vm300, %v317
        %321 = vrot.lane.b32.xlu0 %v299, 56
        %v322 = vpop.permute.xlu0 %321
        %s324 = scalar_lea.vmem %s262, 4 [#allocation8]
        %325 = vst.msk [vmem:[%s324] sm:$0xf] %vm300, %v322
        %326 = vrot.lane.b32.xlu0 %v299, 112
        %v327 = vpop.permute.xlu0 %326
        %s329 = scalar_lea.vmem %s250, 8 [#allocation6]
        %330 = vst.msk [vmem:[%s329] sm:$0xf] %vm300, %v327
        %331 = vrot.lane.b32.xlu0 %v299, 80
        %v332 = vpop.permute.xlu0 %331
        %s334 = scalar_lea.vmem %s256, 8 [#allocation7]
        %335 = vst.msk [vmem:[%s334] sm:$0xf] %vm300, %v332
        %336 = vrot.lane.b32.xlu0 %v299, 48
        %v337 = vpop.permute.xlu0 %336
        %s339 = scalar_lea.vmem %s262, 8 [#allocation8]
        %340 = vst.msk [vmem:[%s339] sm:$0xf] %vm300, %v337
        %341 = vrot.lane.b32.xlu0 %v299, 104
        %v342 = vpop.permute.xlu0 %341
        %s344 = scalar_lea.vmem %s250, 12 [#allocation6]
        %345 = vst.msk [vmem:[%s344] sm:$0xf] %vm300, %v342
        %346 = vrot.lane.b32.xlu0 %v299, 72
        %v347 = vpop.permute.xlu0 %346
        %s349 = scalar_lea.vmem %s256, 12 [#allocation7]
        %350 = vst.msk [vmem:[%s349] sm:$0xf] %vm300, %v347
        %351 = vrot.lane.b32.xlu0 %v299, 40
        %v352 = vpop.permute.xlu0 %351
        %s354 = scalar_lea.vmem %s262, 12 [#allocation8]
        %355 = vst.msk [vmem:[%s354] sm:$0xf] %vm300, %v352
        %s356 = sand.u32 %s91, 1
        %s357 = sand.u32 %s91, 1
        %s358 = smul.addr %s357, 16
        %s359 = scalar_lea.vmem [#allocation6], %s358
        %s360 = sand.u32 %s119, 1
        %s361 = sand.u32 %s119, 1
        %s362 = smul.addr %s361, 16
        %s363 = scalar_lea.vmem [#allocation7], %s362
        %s364 = sand.u32 %s147, 1
        %s365 = sand.u32 %s147, 1
        %s366 = smul.addr %s365, 16
        %s367 = scalar_lea.vmem [#allocation8], %s366
        // Predicated region
        $region37: #{tpu_custom_call.1} parent=27 // pred_check
          %p368 = pneg %p101
        $region38: #{tpu_custom_call.1} parent=27 // pred_check_branch
          %370 = sbr.rel (%p368) target = $region40
        $region39: #{tpu_custom_call.1} parent=27 // pred_region
          %s371 = smul.addr %s24, 8
          %s372 = sadd.s32 %s25, %s371
          %s373 = smul.addr %s372, 4
          %s374 = scalar_lea.vmem %s2, %s373
          // Predicated region
          $region41: #{tpu_custom_call.1} parent=39 // pred_check
            _
          $region42: #{tpu_custom_call.1} parent=39 // pred_check_branch
            %376 = sbr.rel (0) target = $region44
          $region43: #{tpu_custom_call.1} parent=39 // pred_region
            // Predicated region
            $region45: #{tpu_custom_call.1} parent=43 // pred_check
              _
            $region46: #{tpu_custom_call.1} parent=43 // pred_check_branch
              %378 = sbr.rel target = $region48
            $region47: #{tpu_custom_call.1} parent=43 // pred_region
              // Predicated region
              $region60: #{tpu_custom_call.1} parent=47 // pred_check
                _
              $region61: #{tpu_custom_call.1} parent=47 // pred_check_branch
                %400 = sbr.rel (0) target = $region63
              $region62: #{tpu_custom_call.1} parent=47 // pred_region
                loop: start=0, step=1, limit=1
                $region64: #{tpu_custom_call.1} parent=62 // loop_pre_header
                  _
                $region65: #{tpu_custom_call.1} parent=62 // loop_header
                  %s402 = sphi 0, %s406
                  %p403 = scmp.ge.s32.totalorder %s402, 1
                  %s407 = sphi %s359, %s359
                  %s408 = sphi %s374, %s374
                $region66: #{tpu_custom_call.1} parent=62 // loop_header_branch
                  %405 = sbr.rel (%p403) target = $region70
                $region67: #{tpu_custom_call.1} parent=62 // loop_body
                  _
                $region68: #{tpu_custom_call.1} parent=62 // loop_footer
                  %s406 = sadd.s32 1, %s402
                $region69: #{tpu_custom_call.1} parent=62 // loop_footer_branch
                  %401 = sbr.rel target = $region65
                $region70: #{tpu_custom_call.1} parent=62 // loop_exit
                  _
                %s410 = ssub.s32 16, 1
                loop: start=0, step=1, limit=1
                $region71: #{tpu_custom_call.1} parent=62 // loop_pre_header
                  _
                $region72: #{tpu_custom_call.1} parent=62 // loop_header
                  %s412 = sphi 0, %s416
                  %p413 = scmp.ge.s32.totalorder %s412, 1
                  %s417 = sphi %s359, %s359
                  %s418 = sphi %s374, %s374
                $region73: #{tpu_custom_call.1} parent=62 // loop_header_branch
                  %415 = sbr.rel (%p413) target = $region77
                $region74: #{tpu_custom_call.1} parent=62 // loop_body
                  %v419 = vld [vmem:[%s417] sm:%s410]
                  %420 = vst [vmem:[%s418] sm:%s410] %v419
                  %v421 = vld [vmem:[%s417 + $0x4] sm:%s410]
                  %422 = vst [vmem:[%s418 + $0x8] sm:%s410] %v421
                  %v423 = vld [vmem:[%s417 + $0x8] sm:%s410]
                  %424 = vst [vmem:[%s418 + $0x10] sm:%s410] %v423
                  %v425 = vld [vmem:[%s417 + $0xc] sm:%s410]
                  %426 = vst [vmem:[%s418 + $0x18] sm:%s410] %v425
                $region75: #{tpu_custom_call.1} parent=62 // loop_footer
                  %s416 = sadd.s32 1, %s412
                $region76: #{tpu_custom_call.1} parent=62 // loop_footer_branch
                  %411 = sbr.rel target = $region72
                $region77: #{tpu_custom_call.1} parent=62 // loop_exit
                  _
              $region63: #{tpu_custom_call.1} parent=47 // pred_fallthru
                _
            $region48: #{tpu_custom_call.1} parent=43 // pred_fallthru
              _
            // Predicated region
            $region49: #{tpu_custom_call.1} parent=43 // pred_check
              _
            $region50: #{tpu_custom_call.1} parent=43 // pred_check_branch
              %380 = sbr.rel (0) target = $region52
            $region51: #{tpu_custom_call.1} parent=43 // pred_region
              %s382 = ssub.s32 16, 1
              loop: start=0, step=1, limit=1
              $region53: #{tpu_custom_call.1} parent=51 // loop_pre_header
                _
              $region54: #{tpu_custom_call.1} parent=51 // loop_header
                %s384 = sphi 0, %s388
                %p385 = scmp.ge.s32.totalorder %s384, 1
                %s389 = sphi %s359, %s359
                %s390 = sphi %s374, %s374
              $region55: #{tpu_custom_call.1} parent=51 // loop_header_branch
                %387 = sbr.rel (%p385) target = $region59
              $region56: #{tpu_custom_call.1} parent=51 // loop_body
                %v391 = vld [vmem:[%s389] sm:%s382]
                %392 = vst [vmem:[%s390] sm:%s382] %v391
                %v393 = vld [vmem:[%s389 + $0x4] sm:%s382]
                %394 = vst [vmem:[%s390 + $0x8] sm:%s382] %v393
                %v395 = vld [vmem:[%s389 + $0x8] sm:%s382]
                %396 = vst [vmem:[%s390 + $0x10] sm:%s382] %v395
                %v397 = vld [vmem:[%s389 + $0xc] sm:%s382]
                %398 = vst [vmem:[%s390 + $0x18] sm:%s382] %v397
              $region57: #{tpu_custom_call.1} parent=51 // loop_footer
                %s388 = sadd.s32 1, %s384
              $region58: #{tpu_custom_call.1} parent=51 // loop_footer_branch
                %383 = sbr.rel target = $region54
              $region59: #{tpu_custom_call.1} parent=51 // loop_exit
                _
            $region52: #{tpu_custom_call.1} parent=43 // pred_fallthru
              _
          $region44: #{tpu_custom_call.1} parent=39 // pred_fallthru
            _
          %427 = vnop
        $region40: #{tpu_custom_call.1} parent=27 // pred_fallthru
          _
        // Predicated region
        $region78: #{tpu_custom_call.1} parent=27 // pred_check
          %p428 = pneg %p129
        $region79: #{tpu_custom_call.1} parent=27 // pred_check_branch
          %430 = sbr.rel (%p428) target = $region81
        $region80: #{tpu_custom_call.1} parent=27 // pred_region
          %s431 = smul.addr %s24, 8
          %s432 = sadd.s32 %s25, %s431
          %s433 = smul.addr %s432, 4
          %s434 = scalar_lea.vmem %s3, %s433
          // Predicated region
          $region82: #{tpu_custom_call.1} parent=80 // pred_check
            _
          $region83: #{tpu_custom_call.1} parent=80 // pred_check_branch
            %436 = sbr.rel (0) target = $region85
          $region84: #{tpu_custom_call.1} parent=80 // pred_region
            // Predicated region
            $region86: #{tpu_custom_call.1} parent=84 // pred_check
              _
            $region87: #{tpu_custom_call.1} parent=84 // pred_check_branch
              %438 = sbr.rel target = $region89
            $region88: #{tpu_custom_call.1} parent=84 // pred_region
              // Predicated region
              $region101: #{tpu_custom_call.1} parent=88 // pred_check
                _
              $region102: #{tpu_custom_call.1} parent=88 // pred_check_branch
                %460 = sbr.rel (0) target = $region104
              $region103: #{tpu_custom_call.1} parent=88 // pred_region
                loop: start=0, step=1, limit=1
                $region105: #{tpu_custom_call.1} parent=103 // loop_pre_header
                  _
                $region106: #{tpu_custom_call.1} parent=103 // loop_header
                  %s462 = sphi 0, %s466
                  %p463 = scmp.ge.s32.totalorder %s462, 1
                  %s467 = sphi %s363, %s363
                  %s468 = sphi %s434, %s434
                $region107: #{tpu_custom_call.1} parent=103 // loop_header_branch
                  %465 = sbr.rel (%p463) target = $region111
                $region108: #{tpu_custom_call.1} parent=103 // loop_body
                  _
                $region109: #{tpu_custom_call.1} parent=103 // loop_footer
                  %s466 = sadd.s32 1, %s462
                $region110: #{tpu_custom_call.1} parent=103 // loop_footer_branch
                  %461 = sbr.rel target = $region106
                $region111: #{tpu_custom_call.1} parent=103 // loop_exit
                  _
                %s470 = ssub.s32 16, 1
                loop: start=0, step=1, limit=1
                $region112: #{tpu_custom_call.1} parent=103 // loop_pre_header
                  _
                $region113: #{tpu_custom_call.1} parent=103 // loop_header
                  %s472 = sphi 0, %s476
                  %p473 = scmp.ge.s32.totalorder %s472, 1
                  %s477 = sphi %s363, %s363
                  %s478 = sphi %s434, %s434
                $region114: #{tpu_custom_call.1} parent=103 // loop_header_branch
                  %475 = sbr.rel (%p473) target = $region118
                $region115: #{tpu_custom_call.1} parent=103 // loop_body
                  %v479 = vld [vmem:[%s477] sm:%s470]
                  %480 = vst [vmem:[%s478] sm:%s470] %v479
                  %v481 = vld [vmem:[%s477 + $0x4] sm:%s470]
                  %482 = vst [vmem:[%s478 + $0x8] sm:%s470] %v481
                  %v483 = vld [vmem:[%s477 + $0x8] sm:%s470]
                  %484 = vst [vmem:[%s478 + $0x10] sm:%s470] %v483
                  %v485 = vld [vmem:[%s477 + $0xc] sm:%s470]
                  %486 = vst [vmem:[%s478 + $0x18] sm:%s470] %v485
                $region116: #{tpu_custom_call.1} parent=103 // loop_footer
                  %s476 = sadd.s32 1, %s472
                $region117: #{tpu_custom_call.1} parent=103 // loop_footer_branch
                  %471 = sbr.rel target = $region113
                $region118: #{tpu_custom_call.1} parent=103 // loop_exit
                  _
              $region104: #{tpu_custom_call.1} parent=88 // pred_fallthru
                _
            $region89: #{tpu_custom_call.1} parent=84 // pred_fallthru
              _
            // Predicated region
            $region90: #{tpu_custom_call.1} parent=84 // pred_check
              _
            $region91: #{tpu_custom_call.1} parent=84 // pred_check_branch
              %440 = sbr.rel (0) target = $region93
            $region92: #{tpu_custom_call.1} parent=84 // pred_region
              %s442 = ssub.s32 16, 1
              loop: start=0, step=1, limit=1
              $region94: #{tpu_custom_call.1} parent=92 // loop_pre_header
                _
              $region95: #{tpu_custom_call.1} parent=92 // loop_header
                %s444 = sphi 0, %s448
                %p445 = scmp.ge.s32.totalorder %s444, 1
                %s449 = sphi %s363, %s363
                %s450 = sphi %s434, %s434
              $region96: #{tpu_custom_call.1} parent=92 // loop_header_branch
                %447 = sbr.rel (%p445) target = $region100
              $region97: #{tpu_custom_call.1} parent=92 // loop_body
                %v451 = vld [vmem:[%s449] sm:%s442]
                %452 = vst [vmem:[%s450] sm:%s442] %v451
                %v453 = vld [vmem:[%s449 + $0x4] sm:%s442]
                %454 = vst [vmem:[%s450 + $0x8] sm:%s442] %v453
                %v455 = vld [vmem:[%s449 + $0x8] sm:%s442]
                %456 = vst [vmem:[%s450 + $0x10] sm:%s442] %v455
                %v457 = vld [vmem:[%s449 + $0xc] sm:%s442]
                %458 = vst [vmem:[%s450 + $0x18] sm:%s442] %v457
              $region98: #{tpu_custom_call.1} parent=92 // loop_footer
                %s448 = sadd.s32 1, %s444
              $region99: #{tpu_custom_call.1} parent=92 // loop_footer_branch
                %443 = sbr.rel target = $region95
              $region100: #{tpu_custom_call.1} parent=92 // loop_exit
                _
            $region93: #{tpu_custom_call.1} parent=84 // pred_fallthru
              _
          $region85: #{tpu_custom_call.1} parent=80 // pred_fallthru
            _
          %487 = vnop
        $region81: #{tpu_custom_call.1} parent=27 // pred_fallthru
          _
        // Predicated region
        $region119: #{tpu_custom_call.1} parent=27 // pred_check
          %p488 = pneg %p157
        $region120: #{tpu_custom_call.1} parent=27 // pred_check_branch
          %490 = sbr.rel (%p488) target = $region122
        $region121: #{tpu_custom_call.1} parent=27 // pred_region
          %s491 = smul.addr %s24, 8
          %s492 = sadd.s32 %s25, %s491
          %s493 = smul.addr %s492, 4
          %s494 = scalar_lea.vmem %s4, %s493
          // Predicated region
          $region123: #{tpu_custom_call.1} parent=121 // pred_check
            _
          $region124: #{tpu_custom_call.1} parent=121 // pred_check_branch
            %496 = sbr.rel (0) target = $region126
          $region125: #{tpu_custom_call.1} parent=121 // pred_region
            // Predicated region
            $region127: #{tpu_custom_call.1} parent=125 // pred_check
              _
            $region128: #{tpu_custom_call.1} parent=125 // pred_check_branch
              %498 = sbr.rel target = $region130
            $region129: #{tpu_custom_call.1} parent=125 // pred_region
              // Predicated region
              $region142: #{tpu_custom_call.1} parent=129 // pred_check
                _
              $region143: #{tpu_custom_call.1} parent=129 // pred_check_branch
                %520 = sbr.rel (0) target = $region145
              $region144: #{tpu_custom_call.1} parent=129 // pred_region
                loop: start=0, step=1, limit=1
                $region146: #{tpu_custom_call.1} parent=144 // loop_pre_header
                  _
                $region147: #{tpu_custom_call.1} parent=144 // loop_header
                  %s522 = sphi 0, %s526
                  %p523 = scmp.ge.s32.totalorder %s522, 1
                  %s527 = sphi %s367, %s367
                  %s528 = sphi %s494, %s494
                $region148: #{tpu_custom_call.1} parent=144 // loop_header_branch
                  %525 = sbr.rel (%p523) target = $region152
                $region149: #{tpu_custom_call.1} parent=144 // loop_body
                  _
                $region150: #{tpu_custom_call.1} parent=144 // loop_footer
                  %s526 = sadd.s32 1, %s522
                $region151: #{tpu_custom_call.1} parent=144 // loop_footer_branch
                  %521 = sbr.rel target = $region147
                $region152: #{tpu_custom_call.1} parent=144 // loop_exit
                  _
                %s530 = ssub.s32 16, 1
                loop: start=0, step=1, limit=1
                $region153: #{tpu_custom_call.1} parent=144 // loop_pre_header
                  _
                $region154: #{tpu_custom_call.1} parent=144 // loop_header
                  %s532 = sphi 0, %s536
                  %p533 = scmp.ge.s32.totalorder %s532, 1
                  %s537 = sphi %s367, %s367
                  %s538 = sphi %s494, %s494
                $region155: #{tpu_custom_call.1} parent=144 // loop_header_branch
                  %535 = sbr.rel (%p533) target = $region159
                $region156: #{tpu_custom_call.1} parent=144 // loop_body
                  %v539 = vld [vmem:[%s537] sm:%s530]
                  %540 = vst [vmem:[%s538] sm:%s530] %v539
                  %v541 = vld [vmem:[%s537 + $0x4] sm:%s530]
                  %542 = vst [vmem:[%s538 + $0x8] sm:%s530] %v541
                  %v543 = vld [vmem:[%s537 + $0x8] sm:%s530]
                  %544 = vst [vmem:[%s538 + $0x10] sm:%s530] %v543
                  %v545 = vld [vmem:[%s537 + $0xc] sm:%s530]
                  %546 = vst [vmem:[%s538 + $0x18] sm:%s530] %v545
                $region157: #{tpu_custom_call.1} parent=144 // loop_footer
                  %s536 = sadd.s32 1, %s532
                $region158: #{tpu_custom_call.1} parent=144 // loop_footer_branch
                  %531 = sbr.rel target = $region154
                $region159: #{tpu_custom_call.1} parent=144 // loop_exit
                  _
              $region145: #{tpu_custom_call.1} parent=129 // pred_fallthru
                _
            $region130: #{tpu_custom_call.1} parent=125 // pred_fallthru
              _
            // Predicated region
            $region131: #{tpu_custom_call.1} parent=125 // pred_check
              _
            $region132: #{tpu_custom_call.1} parent=125 // pred_check_branch
              %500 = sbr.rel (0) target = $region134
            $region133: #{tpu_custom_call.1} parent=125 // pred_region
              %s502 = ssub.s32 16, 1
              loop: start=0, step=1, limit=1
              $region135: #{tpu_custom_call.1} parent=133 // loop_pre_header
                _
              $region136: #{tpu_custom_call.1} parent=133 // loop_header
                %s504 = sphi 0, %s508
                %p505 = scmp.ge.s32.totalorder %s504, 1
                %s509 = sphi %s367, %s367
                %s510 = sphi %s494, %s494
              $region137: #{tpu_custom_call.1} parent=133 // loop_header_branch
                %507 = sbr.rel (%p505) target = $region141
              $region138: #{tpu_custom_call.1} parent=133 // loop_body
                %v511 = vld [vmem:[%s509] sm:%s502]
                %512 = vst [vmem:[%s510] sm:%s502] %v511
                %v513 = vld [vmem:[%s509 + $0x4] sm:%s502]
                %514 = vst [vmem:[%s510 + $0x8] sm:%s502] %v513
                %v515 = vld [vmem:[%s509 + $0x8] sm:%s502]
                %516 = vst [vmem:[%s510 + $0x10] sm:%s502] %v515
                %v517 = vld [vmem:[%s509 + $0xc] sm:%s502]
                %518 = vst [vmem:[%s510 + $0x18] sm:%s502] %v517
              $region139: #{tpu_custom_call.1} parent=133 // loop_footer
                %s508 = sadd.s32 1, %s504
              $region140: #{tpu_custom_call.1} parent=133 // loop_footer_branch
                %503 = sbr.rel target = $region136
              $region141: #{tpu_custom_call.1} parent=133 // loop_exit
                _
            $region134: #{tpu_custom_call.1} parent=125 // pred_fallthru
              _
          $region126: #{tpu_custom_call.1} parent=121 // pred_fallthru
            _
          %547 = vnop
        $region122: #{tpu_custom_call.1} parent=27 // pred_fallthru
          _
      $region28: #{tpu_custom_call.1} parent=5 // pred_fallthru
        _
      %p548 = scmp.le.s32.totalorder 2, %s15
      // Predicated region
      $region160: #{tpu_custom_call.1} parent=5 // pred_check
        %p549 = pneg %p548
      $region161: #{tpu_custom_call.1} parent=5 // pred_check_branch
        %551 = sbr.rel (%p549) target = $region163
      $region162: #{tpu_custom_call.1} parent=5 // pred_region
        %s552 = ssub.s32 %s15, 2
        // Predicated region
        $region164: #{tpu_custom_call.1} parent=162 // pred_check
          %p553 = pneg %p107
        $region165: #{tpu_custom_call.1} parent=162 // pred_check_branch
          %555 = sbr.rel (%p553) target = $region167
        $region166: #{tpu_custom_call.1} parent=162 // pred_region
          %s556 = sand.u32 %s92, 1
          %s557 = sand.u32 %s92, 1
          %s558 = smul.addr %s557, 16
          %s559 = scalar_lea.vmem [#allocation6], %s558
        $region167: #{tpu_custom_call.1} parent=162 // pred_fallthru
          _
        // Predicated region
        $region168: #{tpu_custom_call.1} parent=162 // pred_check
          %p560 = pneg %p135
        $region169: #{tpu_custom_call.1} parent=162 // pred_check_branch
          %562 = sbr.rel (%p560) target = $region171
        $region170: #{tpu_custom_call.1} parent=162 // pred_region
          %s563 = sand.u32 %s120, 1
          %s564 = sand.u32 %s120, 1
          %s565 = smul.addr %s564, 16
          %s566 = scalar_lea.vmem [#allocation7], %s565
        $region171: #{tpu_custom_call.1} parent=162 // pred_fallthru
          _
        // Predicated region
        $region172: #{tpu_custom_call.1} parent=162 // pred_check
          %p567 = pneg %p163
        $region173: #{tpu_custom_call.1} parent=162 // pred_check_branch
          %569 = sbr.rel (%p567) target = $region175
        $region174: #{tpu_custom_call.1} parent=162 // pred_region
          %s570 = sand.u32 %s148, 1
          %s571 = sand.u32 %s148, 1
          %s572 = smul.addr %s571, 16
          %s573 = scalar_lea.vmem [#allocation8], %s572
        $region175: #{tpu_custom_call.1} parent=162 // pred_fallthru
          _
      $region163: #{tpu_custom_call.1} parent=5 // pred_fallthru
        _
    $region6: #{tpu_custom_call.1} parent=1 // loop_footer
      %s19 = sadd.s32 1, %s15
    $region7: #{tpu_custom_call.1} parent=1 // loop_footer_branch
      %14 = sbr.rel target = $region3
    $region8: #{tpu_custom_call.1} parent=1 // loop_exit
      _
    %574 = vsyncpa [#allocation3], 1
    %s575 = scalar_lea.sflag [#allocation3], 1
    %576 = vsyncpa %s575, 1
    %577 = vsyncpa [#allocation5], 1

// kernel: tpu_custom_call.1
$region0: #{tpu_custom_call.1}
  #allocation0 [shape = 'u32[]', space=smem, size = 0x4, offset = 0x4, fixed_abs, tag = 'smem constant byte address 0x4 - core index']
  #allocation1 [shape = 'u32[72,128]{1,0:T(1,128)}', space=vmem, size = 0x9000, scoped, tag = 'internal scratch']
  %s0 = inlined_call_operand.hbm [shape: f32[2,16,32], index: 0, kind: input, shape index: {}]
  %s1 = inlined_call_operand.hbm [shape: bf16[32,96], index: 1, kind: input, shape index: {}]
  %s2 = inlined_call_operand.vmem [shape: bf16[2,4,16,8], index: 2, kind: output, shape index: {0}]
  %s3 = inlined_call_operand.vmem [shape: bf16[2,4,16,8], index: 3, kind: output, shape index: {1}]
  %s4 = inlined_call_operand.vmem [shape: bf16[2,4,16,8], index: 4, kind: output, shape index: {2}]
  %5 = xla_tuple %s2, %s3, %s4
  %s6 = sld [smem:[#allocation0]]
  $region176: #{tpu_custom_call.1} parent=0
    _
  %s8 = ssub.s32 1, %s6
  %s9 = scalar_select 0, %s8, %s6
  $region1: #{tpu_custom_call.1} parent=0
    #allocation2 [shape = 'u8[8192]{0}', space=vmem, size = 0x2000, scoped, tag = 'input window, operand 0']
    #allocation3 [shape = 's32[2]{0}', space=sflag, size = 0x8, scoped, tag = 'scoped memory for tpu_custom_call.1']
    #allocation4 [shape = 'u8[8192]{0}', space=vmem, size = 0x2000, scoped, tag = 'input window, operand 1, single buffered']
    #allocation5 [shape = 's32[1]{0}', space=sflag, size = 0x4, scoped, tag = 'scoped memory for tpu_custom_call.1']
    #allocation6 [shape = 'u8[16384]{0}', space=vmem, size = 0x4000, scoped, tag = 'output window, operand 0']
    #allocation7 [shape = 'u8[16384]{0}', space=vmem, size = 0x4000, scoped, tag = 'output window, operand 1']
    #allocation8 [shape = 'u8[16384]{0}', space=vmem, size = 0x4000, scoped, tag = 'output window, operand 2']
    %10 = vsyncpa [#allocation3], 0
    %s11 = scalar_lea.sflag [#allocation3], 1
    %12 = vsyncpa %s11, 0
    %13 = vsyncpa [#allocation5], 0
    loop: start=0, step=1, limit=6
    $region2: #{tpu_custom_call.1} parent=1 // loop_pre_header
      _
    $region3: #{tpu_custom_call.1} parent=1 // loop_header
      %s15 = sphi 0, %s19
      %p16 = scmp.ge.s32.totalorder %s15, 6
      %s22 = sphi 0, %s34
      %s23 = sphi 0, %s30
      %s24 = sphi 0, %s22
      %s25 = sphi 0, %s23
      %s26 = sphi 0, %s24
      %s27 = sphi 0, %s25
      %s39 = sphi 0, %s41
      %s42 = sphi 0, %s39
      %s43 = sphi 0, %s42
      %s59 = sphi 0, %s43
      %s63 = sphi 0, %s63
      %s65 = sphi 0, %s63
      %s66 = sphi 0, %s65
      %s80 = sphi 0, %s66
      %s88 = sphi 0, %s90
      %s91 = sphi 0, %s88
      %s92 = sphi 0, %s91
      %s108 = sphi 0, %s92
      %s116 = sphi 0, %s118
      %s119 = sphi 0, %s116
      %s120 = sphi 0, %s119
      %s136 = sphi 0, %s120
      %s144 = sphi 0, %s146
      %s147 = sphi 0, %s144
      %s148 = sphi 0, %s147
      %s164 = sphi 0, %s148
    $region4: #{tpu_custom_call.1} parent=1 // loop_header_branch
      %18 = sbr.rel (%p16) target = $region8
    $region5: #{tpu_custom_call.1} parent=1 // loop_body
      %s20 = ssub.s32 %s15, 1
      %s21 = ssub.s32 %s15, 2
      %s28 = sadd.s32 1, %s23
      %p29 = scmp.ge.s32.totalorder %s28, 2
      %s30 = scalar_select %p29, 0, %s28
      %s31 = sadd.s32 1, %s22
      %s32 = scalar_select %p29, %s31, %s22
      %p33 = scmp.ge.s32.totalorder %s32, 2
      %s34 = scalar_select %p33, 0, %s32
      %s35 = ssub.s32 %s22, %s34
      %s36 = ssub.s32 %s23, %s30
      %s37 = sor.u32 %s35, %s36
      %p38 = scmp.eq.s32.totalorder %s37, 0
      %s40 = sadd.s32 %s39, 1
      %s41 = scalar_select %p38, %s39, %s40
      %p44 = pneg %p38
      %p45 = scmp.eq.s32.totalorder %s15, 3
      %p46 = por %p44, %p45
      %p47 = scmp.ne.s32.totalorder %s39, %s42
      %p48 = scmp.eq.s32.totalorder %s15, 0
      %p49 = por %p47, %p48
      %p50 = scmp.ne.s32.totalorder %s39, %s42
      %p51 = scmp.eq.s32.totalorder %s20, 3
      %p52 = por %p50, %p51
      %p53 = scmp.ne.s32.totalorder %s42, %s43
      %p54 = scmp.eq.s32.totalorder %s20, 0
      %p55 = por %p53, %p54
      %p56 = scmp.ne.s32.totalorder %s42, %s43
      %p57 = scmp.eq.s32.totalorder %s21, 3
      %p58 = por %p56, %p57
      %p60 = scmp.ne.s32.totalorder %s43, %s59
      %p61 = scmp.eq.s32.totalorder %s21, 0
      %p62 = por %p60, %p61
      %s64 = sadd.s32 %s63, 1
      %p67 = scmp.eq.s32.totalorder %s15, 3
      %p68 = scmp.ne.s32.totalorder %s63, %s65
      %p69 = scmp.eq.s32.totalorder %s15, 0
      %p70 = por %p68, %p69
      %p71 = scmp.ne.s32.totalorder %s63, %s65
      %p72 = scmp.eq.s32.totalorder %s20, 3
      %p73 = por %p71, %p72
      %p74 = scmp.ne.s32.totalorder %s65, %s66
      %p75 = scmp.eq.s32.totalorder %s20, 0
      %p76 = por %p74, %p75
      %p77 = scmp.ne.s32.totalorder %s65, %s66
      %p78 = scmp.eq.s32.totalorder %s21, 3
      %p79 = por %p77, %p78
      %p81 = scmp.ne.s32.totalorder %s66, %s80
      %p82 = scmp.eq.s32.totalorder %s21, 0
      %p83 = por %p81, %p82
      %s84 = ssub.s32 %s22, %s34
      %s85 = ssub.s32 %s23, %s30
      %s86 = sor.u32 %s84, %s85
      %p87 = scmp.eq.s32.totalorder %s86, 0
      %s89 = sadd.s32 %s88, 1
      %s90 = scalar_select %p87, %s88, %s89
      %p93 = pneg %p87
      %p94 = scmp.eq.s32.totalorder %s15, 3
      %p95 = por %p93, %p94
      %p96 = scmp.ne.s32.totalorder %s88, %s91
      %p97 = scmp.eq.s32.totalorder %s15, 0
      %p98 = por %p96, %p97
      %p99 = scmp.ne.s32.totalorder %s88, %s91
      %p100 = scmp.eq.s32.totalorder %s20, 3
      %p101 = por %p99, %p100
      %p102 = scmp.ne.s32.totalorder %s91, %s92
      %p103 = scmp.eq.s32.totalorder %s20, 0
      %p104 = por %p102, %p103
      %p105 = scmp.ne.s32.totalorder %s91, %s92
      %p106 = scmp.eq.s32.totalorder %s21, 3
      %p107 = por %p105, %p106
      %p109 = scmp.ne.s32.totalorder %s92, %s108
      %p110 = scmp.eq.s32.totalorder %s21, 0
      %p111 = por %p109, %p110
      %s112 = ssub.s32 %s22, %s34
      %s113 = ssub.s32 %s23, %s30
      %s114 = sor.u32 %s112, %s113
      %p115 = scmp.eq.s32.totalorder %s114, 0
      %s117 = sadd.s32 %s116, 1
      %s118 = scalar_select %p115, %s116, %s117
      %p121 = pneg %p115
      %p122 = scmp.eq.s32.totalorder %s15, 3
      %p123 = por %p121, %p122
      %p124 = scmp.ne.s32.totalorder %s116, %s119
      %p125 = scmp.eq.s32.totalorder %s15, 0
      %p126 = por %p124, %p125
      %p127 = scmp.ne.s32.totalorder %s116, %s119
      %p128 = scmp.eq.s32.totalorder %s20, 3
      %p129 = por %p127, %p128
      %p130 = scmp.ne.s32.totalorder %s119, %s120
      %p131 = scmp.eq.s32.totalorder %s20, 0
      %p132 = por %p130, %p131
      %p133 = scmp.ne.s32.totalorder %s119, %s120
      %p134 = scmp.eq.s32.totalorder %s21, 3
      %p135 = por %p133, %p134
      %p137 = scmp.ne.s32.totalorder %s120, %s136
      %p138 = scmp.eq.s32.totalorder %s21, 0
      %p139 = por %p137, %p138
      %s140 = ssub.s32 %s22, %s34
      %s141 = ssub.s32 %s23, %s30
      %s142 = sor.u32 %s140, %s141
      %p143 = scmp.eq.s32.totalorder %s142, 0
      %s145 = sadd.s32 %s144, 1
      %s146 = scalar_select %p143, %s144, %s145
      %p149 = pneg %p143
      %p150 = scmp.eq.s32.totalorder %s15, 3
      %p151 = por %p149, %p150
      %p152 = scmp.ne.s32.totalorder %s144, %s147
      %p153 = scmp.eq.s32.totalorder %s15, 0
      %p154 = por %p152, %p153
      %p155 = scmp.ne.s32.totalorder %s144, %s147
      %p156 = scmp.eq.s32.totalorder %s20, 3
      %p157 = por %p155, %p156
      %p158 = scmp.ne.s32.totalorder %s147, %s148
      %p159 = scmp.eq.s32.totalorder %s20, 0
      %p160 = por %p158, %p159
      %p161 = scmp.ne.s32.totalorder %s147, %s148
      %p162 = scmp.eq.s32.totalorder %s21, 3
      %p163 = por %p161, %p162
      %p165 = scmp.ne.s32.totalorder %s148, %s164
      %p166 = scmp.eq.s32.totalorder %s21, 0
      %p167 = por %p165, %p166
      %p168 = scmp.le.s32.totalorder 1, %s15
      %p169 = scmp.lt.s32.totalorder %s15, 5
      %p170 = pnand %p168, %p169
      %p171 = pneg %p170
      // Predicated region
      $region9: #{tpu_custom_call.1} parent=5 // pred_check
        _
      $region10: #{tpu_custom_call.1} parent=5 // pred_check_branch
        %173 = sbr.rel (%p170) target = $region12
      $region11: #{tpu_custom_call.1} parent=5 // pred_region
        %s174 = ssub.s32 %s15, 1
        // Predicated region
        $region13: #{tpu_custom_call.1} parent=11 // pred_check
          %p175 = pneg %p76
        $region14: #{tpu_custom_call.1} parent=11 // pred_check_branch
          %177 = sbr.rel (%p175) target = $region16
        $region15: #{tpu_custom_call.1} parent=11 // pred_region
          %179 = vsyncadd [#allocation5], 0
          %s180 = sshll.u32 %s1, 4
          %s181 = int_to_ptr.hbm [resolvable:$true] %s180
          %s182 = sshll.u32 [#allocation4], 4
          %s183 = int_to_ptr.vmem [resolvable:$true] %s182
          %188 = dma.hbm_to_vmem [thread:$0]  %s181, 256, %s183, [#allocation5], 64, 64, 4
        $region16: #{tpu_custom_call.1} parent=11 // pred_fallthru
          _
      $region12: #{tpu_custom_call.1} parent=5 // pred_fallthru
        _
      %p189 = scmp.lt.s32.totalorder %s15, 4
      // Predicated region
      $region17: #{tpu_custom_call.1} parent=5 // pred_check
        %p190 = pneg %p189
      $region18: #{tpu_custom_call.1} parent=5 // pred_check_branch
        %192 = sbr.rel (%p190) target = $region20
      $region19: #{tpu_custom_call.1} parent=5 // pred_region
        // Predicated region
        $region21: #{tpu_custom_call.1} parent=19 // pred_check
          %p193 = pneg %p49
        $region22: #{tpu_custom_call.1} parent=19 // pred_check_branch
          %195 = sbr.rel (%p193) target = $region24
        $region23: #{tpu_custom_call.1} parent=19 // pred_region
          %s196 = sand.u32 %s39, 1
          %s197 = scalar_lea.sflag [#allocation3], %s196
          %s198 = sand.u32 %s39, 1
          %s199 = smul.addr %s198, 8
          %s200 = scalar_lea.vmem [#allocation2], %s199
          %202 = vsyncadd %s197, 0
          %s203 = smul.addr %s22, 2
          %s204 = sadd.s32 %s23, %s203
          %s205 = smul.addr %s204, 8
          %s206 = scalar_lea.hbm %s0, %s205
          %s208 = sshll.u32 %s206, 4
          %s209 = int_to_ptr.hbm [resolvable:$true] %s208
          %s210 = sshll.u32 %s200, 4
          %s211 = int_to_ptr.vmem [resolvable:$true] %s210
          %213 = dma.hbm_to_vmem [thread:$0]  %s209, 128, %s211, %s197
        $region24: #{tpu_custom_call.1} parent=19 // pred_fallthru
          _
      $region20: #{tpu_custom_call.1} parent=5 // pred_fallthru
        _
      %p214 = scmp.le.s32.totalorder 1, %s15
      %p215 = scmp.lt.s32.totalorder %s15, 5
      %p216 = pnand %p214, %p215
      %p217 = pneg %p216
      // Predicated region
      $region25: #{tpu_custom_call.1} parent=5 // pred_check
        _
      $region26: #{tpu_custom_call.1} parent=5 // pred_check_branch
        %219 = sbr.rel (%p216) target = $region28
      $region27: #{tpu_custom_call.1} parent=5 // pred_region
        %s220 = ssub.s32 %s15, 1
        %s221 = sand.u32 %s42, 1
        %s222 = scalar_lea.sflag [#allocation3], %s221
        %s223 = sand.u32 %s42, 1
        %s224 = smul.addr %s223, 8
        %s225 = scalar_lea.vmem [#allocation2], %s224
        // Predicated region
        $region29: #{tpu_custom_call.1} parent=27 // pred_check
          %p226 = pneg %p55
        $region30: #{tpu_custom_call.1} parent=27 // pred_check_branch
          %228 = sbr.rel (%p226) target = $region32
        $region31: #{tpu_custom_call.1} parent=27 // pred_region
          %230 = dma.done %s222, 128
        $region32: #{tpu_custom_call.1} parent=27 // pred_fallthru
          _
        // Predicated region
        $region33: #{tpu_custom_call.1} parent=27 // pred_check
          %p231 = pneg %p76
        $region34: #{tpu_custom_call.1} parent=27 // pred_check_branch
          %233 = sbr.rel (%p231) target = $region36
        $region35: #{tpu_custom_call.1} parent=27 // pred_region
          %235 = dma.done [#allocation5], 256
        $region36: #{tpu_custom_call.1} parent=27 // pred_fallthru
          _
        %s236 = sand.u32 %s42, 1
        %s237 = scalar_lea.sflag [#allocation3], %s236
        %s238 = sand.u32 %s42, 1
        %s239 = smul.addr %s238, 8
        %s240 = scalar_lea.vmem [#allocation2], %s239
        %p241 = pneg %p55
        %p242 = pneg %p52
        %p243 = pneg %p76
        %p244 = pneg %p73
        %p245 = pneg %p104
        %p246 = pneg %p101
        %s247 = sand.u32 %s91, 1
        %s248 = sand.u32 %s91, 1
        %s249 = smul.addr %s248, 16
        %s250 = scalar_lea.vmem [#allocation6], %s249
        %p251 = pneg %p132
        %p252 = pneg %p129
        %s253 = sand.u32 %s119, 1
        %s254 = sand.u32 %s119, 1
        %s255 = smul.addr %s254, 16
        %s256 = scalar_lea.vmem [#allocation7], %s255
        %p257 = pneg %p160
        %p258 = pneg %p157
        %s259 = sand.u32 %s147, 1
        %s260 = sand.u32 %s147, 1
        %s261 = smul.addr %s260, 16
        %s262 = scalar_lea.vmem [#allocation8], %s261
        %v264 = vld [vmem:[%s225] sm:$0xff]
        %v265 = vpack.c.bf16 %v264, %v264
        %v266 = vld [vmem:[#allocation4] sm:$0xf]
        %v267 = vld [vmem:[#allocation4 + $0x4] sm:$0xf]
        %v268 = vld [vmem:[#allocation4 + $0x8] sm:$0xf]
        %v269 = vld [vmem:[#allocation4 + $0xc] sm:$0xf]
        %v274 = vunpack.c.l.b16 %v266
        %v275 = vunpack.c.l.b16 %v267
        %v276 = vunpack.c.l.b16 %v268
        %v277 = vunpack.c.l.b16 %v269
        %v278 = vpack.c.b16 %v275, %v274
        %v279 = vpack.c.b16 %v277, %v276
        %vm282 = vcmask 261120
        %v284 = vsel %vm282, %v265, 0
        %286 = vmatpush.bf16.msra.mxu0 0
        %287 = vmatpush.bf16.msra.mxu0 0
        %288 = vmatpush.bf16.msra.mxu0 0
        %289 = vmatpush.bf16.msra.mxu0 0
        %290 = vmatpush.bf16.msra.mxu0 0
        %291 = vmatpush.bf16.msra.mxu0 0
        %292 = vmatpush.bf16.msra.mxu0 %v279
        %293 = vmatpush.bf16.msra.mxu0 %v278
        %294 = vmatmul.bf16.gmra.mxu0 %v284
        %v295 = vpop.f32.mrf.mxu0
        %v296 = vadd.f32 0.0, %v295
        %v297 = vpop.f32.mrf.mxu0
        %298 = vdwg.mxu0
        %v299 = vpack.c.bf16 %v296, %v296
        %vm300 = vcmask 60416
        %301 = vst.msk [vmem:[%s250] sm:$0xf] %vm300, %v299
        %303 = vrot.lane.b32.xlu0 %v299, 96
        %v304 = vpop.permute.xlu0 %303
        %306 = vst.msk [vmem:[%s256] sm:$0xf] %vm300, %v304
        %307 = vrot.lane.b32.xlu0 %v299, 64
        %v308 = vpop.permute.xlu0 %307
        %310 = vst.msk [vmem:[%s262] sm:$0xf] %vm300, %v308
        %311 = vrot.lane.b32.xlu0 %v299, 120
        %v312 = vpop.permute.xlu0 %311
        %s314 = scalar_lea.vmem %s250, 4 [#allocation6]
        %315 = vst.msk [vmem:[%s314] sm:$0xf] %vm300, %v312
        %316 = vrot.lane.b32.xlu0 %v299, 88
        %v317 = vpop.permute.xlu0 %316
        %s319 = scalar_lea.vmem %s256, 4 [#allocation7]
        %320 = vst.msk [vmem:[%s319] sm:$0xf] %vm300, %v317
        %321 = vrot.lane.b32.xlu0 %v299, 56
        %v322 = vpop.permute.xlu0 %321
        %s324 = scalar_lea.vmem %s262, 4 [#allocation8]
        %325 = vst.msk [vmem:[%s324] sm:$0xf] %vm300, %v322
        %326 = vrot.lane.b32.xlu0 %v299, 112
        %v327 = vpop.permute.xlu0 %326
        %s329 = scalar_lea.vmem %s250, 8 [#allocation6]
        %330 = vst.msk [vmem:[%s329] sm:$0xf] %vm300, %v327
        %331 = vrot.lane.b32.xlu0 %v299, 80
        %v332 = vpop.permute.xlu0 %331
        %s334 = scalar_lea.vmem %s256, 8 [#allocation7]
        %335 = vst.msk [vmem:[%s334] sm:$0xf] %vm300, %v332
        %336 = vrot.lane.b32.xlu0 %v299, 48
        %v337 = vpop.permute.xlu0 %336
        %s339 = scalar_lea.vmem %s262, 8 [#allocation8]
        %340 = vst.msk [vmem:[%s339] sm:$0xf] %vm300, %v337
        %341 = vrot.lane.b32.xlu0 %v299, 104
        %v342 = vpop.permute.xlu0 %341
        %s344 = scalar_lea.vmem %s250, 12 [#allocation6]
        %345 = vst.msk [vmem:[%s344] sm:$0xf] %vm300, %v342
        %346 = vrot.lane.b32.xlu0 %v299, 72
        %v347 = vpop.permute.xlu0 %346
        %s349 = scalar_lea.vmem %s256, 12 [#allocation7]
        %350 = vst.msk [vmem:[%s349] sm:$0xf] %vm300, %v347
        %351 = vrot.lane.b32.xlu0 %v299, 40
        %v352 = vpop.permute.xlu0 %351
        %s354 = scalar_lea.vmem %s262, 12 [#allocation8]
        %355 = vst.msk [vmem:[%s354] sm:$0xf] %vm300, %v352
        %s356 = sand.u32 %s91, 1
        %s357 = sand.u32 %s91, 1
        %s358 = smul.addr %s357, 16
        %s359 = scalar_lea.vmem [#allocation6], %s358
        %s360 = sand.u32 %s119, 1
        %s361 = sand.u32 %s119, 1
        %s362 = smul.addr %s361, 16
        %s363 = scalar_lea.vmem [#allocation7], %s362
        %s364 = sand.u32 %s147, 1
        %s365 = sand.u32 %s147, 1
        %s366 = smul.addr %s365, 16
        %s367 = scalar_lea.vmem [#allocation8], %s366
        // Predicated region
        $region37: #{tpu_custom_call.1} parent=27 // pred_check
          %p368 = pneg %p101
        $region38: #{tpu_custom_call.1} parent=27 // pred_check_branch
          %370 = sbr.rel (%p368) target = $region40
        $region39: #{tpu_custom_call.1} parent=27 // pred_region
          %s371 = smul.addr %s24, 8
          %s372 = sadd.s32 %s25, %s371
          %s373 = smul.addr %s372, 4
          %s374 = scalar_lea.vmem %s2, %s373
          // Predicated region
          $region41: #{tpu_custom_call.1} parent=39 // pred_check
            _
          $region42: #{tpu_custom_call.1} parent=39 // pred_check_branch
            %376 = sbr.rel (0) target = $region44
          $region43: #{tpu_custom_call.1} parent=39 // pred_region
            // Predicated region
            $region45: #{tpu_custom_call.1} parent=43 // pred_check
              _
            $region46: #{tpu_custom_call.1} parent=43 // pred_check_branch
              %378 = sbr.rel target = $region48
            $region47: #{tpu_custom_call.1} parent=43 // pred_region
              // Predicated region
              $region60: #{tpu_custom_call.1} parent=47 // pred_check
                _
              $region61: #{tpu_custom_call.1} parent=47 // pred_check_branch
                %400 = sbr.rel (0) target = $region63
              $region62: #{tpu_custom_call.1} parent=47 // pred_region
                loop: start=0, step=1, limit=1
                $region64: #{tpu_custom_call.1} parent=62 // loop_pre_header
                  _
                $region65: #{tpu_custom_call.1} parent=62 // loop_header
                  %s402 = sphi 0, %s406
                  %p403 = scmp.ge.s32.totalorder %s402, 1
                  %s407 = sphi %s359, %s359
                  %s408 = sphi %s374, %s374
                $region66: #{tpu_custom_call.1} parent=62 // loop_header_branch
                  %405 = sbr.rel (%p403) target = $region70
                $region67: #{tpu_custom_call.1} parent=62 // loop_body
                  _
                $region68: #{tpu_custom_call.1} parent=62 // loop_footer
                  %s406 = sadd.s32 1, %s402
                $region69: #{tpu_custom_call.1} parent=62 // loop_footer_branch
                  %401 = sbr.rel target = $region65
                $region70: #{tpu_custom_call.1} parent=62 // loop_exit
                  _
                %s410 = ssub.s32 16, 1
                loop: start=0, step=1, limit=1
                $region71: #{tpu_custom_call.1} parent=62 // loop_pre_header
                  _
                $region72: #{tpu_custom_call.1} parent=62 // loop_header
                  %s412 = sphi 0, %s416
                  %p413 = scmp.ge.s32.totalorder %s412, 1
                  %s417 = sphi %s359, %s359
                  %s418 = sphi %s374, %s374
                $region73: #{tpu_custom_call.1} parent=62 // loop_header_branch
                  %415 = sbr.rel (%p413) target = $region77
                $region74: #{tpu_custom_call.1} parent=62 // loop_body
                  %v419 = vld [vmem:[%s417] sm:%s410]
                  %420 = vst [vmem:[%s418] sm:%s410] %v419
                  %v421 = vld [vmem:[%s417 + $0x4] sm:%s410]
                  %422 = vst [vmem:[%s418 + $0x8] sm:%s410] %v421
                  %v423 = vld [vmem:[%s417 + $0x8] sm:%s410]
                  %424 = vst [vmem:[%s418 + $0x10] sm:%s410] %v423
                  %v425 = vld [vmem:[%s417 + $0xc] sm:%s410]
                  %426 = vst [vmem:[%s418 + $0x18] sm:%s410] %v425
                $region75: #{tpu_custom_call.1} parent=62 // loop_footer
                  %s416 = sadd.s32 1, %s412
                $region76: #{tpu_custom_call.1} parent=62 // loop_footer_branch
                  %411 = sbr.rel target = $region72
                $region77: #{tpu_custom_call.1} parent=62 // loop_exit
                  _
              $region63: #{tpu_custom_call.1} parent=47 // pred_fallthru
                _
            $region48: #{tpu_custom_call.1} parent=43 // pred_fallthru
              _
            // Predicated region
            $region49: #{tpu_custom_call.1} parent=43 // pred_check
              _
            $region50: #{tpu_custom_call.1} parent=43 // pred_check_branch
              %380 = sbr.rel (0) target = $region52
            $region51: #{tpu_custom_call.1} parent=43 // pred_region
              %s382 = ssub.s32 16, 1
              loop: start=0, step=1, limit=1
              $region53: #{tpu_custom_call.1} parent=51 // loop_pre_header
                _
              $region54: #{tpu_custom_call.1} parent=51 // loop_header
                %s384 = sphi 0, %s388
                %p385 = scmp.ge.s32.totalorder %s384, 1
                %s389 = sphi %s359, %s359
                %s390 = sphi %s374, %s374
              $region55: #{tpu_custom_call.1} parent=51 // loop_header_branch
                %387 = sbr.rel (%p385) target = $region59
              $region56: #{tpu_custom_call.1} parent=51 // loop_body
                %v391 = vld [vmem:[%s389] sm:%s382]
                %392 = vst [vmem:[%s390] sm:%s382] %v391
                %v393 = vld [vmem:[%s389 + $0x4] sm:%s382]
                %394 = vst [vmem:[%s390 + $0x8] sm:%s382] %v393
                %v395 = vld [vmem:[%s389 + $0x8] sm:%s382]
                %396 = vst [vmem:[%s390 + $0x10] sm:%s382] %v395
                %v397 = vld [vmem:[%s389 + $0xc] sm:%s382]
                %398 = vst [vmem:[%s390 + $0x18] sm:%s382] %v397
              $region57: #{tpu_custom_call.1} parent=51 // loop_footer
                %s388 = sadd.s32 1, %s384
              $region58: #{tpu_custom_call.1} parent=51 // loop_footer_branch
                %383 = sbr.rel target = $region54
              $region59: #{tpu_custom_call.1} parent=51 // loop_exit
                _
            $region52: #{tpu_custom_call.1} parent=43 // pred_fallthru
              _
          $region44: #{tpu_custom_call.1} parent=39 // pred_fallthru
            _
          %427 = vnop
        $region40: #{tpu_custom_call.1} parent=27 // pred_fallthru
          _
        // Predicated region
        $region78: #{tpu_custom_call.1} parent=27 // pred_check
          %p428 = pneg %p129
        $region79: #{tpu_custom_call.1} parent=27 // pred_check_branch
          %430 = sbr.rel (%p428) target = $region81
        $region80: #{tpu_custom_call.1} parent=27 // pred_region
          %s431 = smul.addr %s24, 8
          %s432 = sadd.s32 %s25, %s431
          %s433 = smul.addr %s432, 4
          %s434 = scalar_lea.vmem %s3, %s433
          // Predicated region
          $region82: #{tpu_custom_call.1} parent=80 // pred_check
            _
          $region83: #{tpu_custom_call.1} parent=80 // pred_check_branch
            %436 = sbr.rel (0) target = $region85
          $region84: #{tpu_custom_call.1} parent=80 // pred_region
            // Predicated region
            $region86: #{tpu_custom_call.1} parent=84 // pred_check
              _
            $region87: #{tpu_custom_call.1} parent=84 // pred_check_branch
              %438 = sbr.rel target = $region89
            $region88: #{tpu_custom_call.1} parent=84 // pred_region
              // Predicated region
              $region101: #{tpu_custom_call.1} parent=88 // pred_check
                _
              $region102: #{tpu_custom_call.1} parent=88 // pred_check_branch
                %460 = sbr.rel (0) target = $region104
              $region103: #{tpu_custom_call.1} parent=88 // pred_region
                loop: start=0, step=1, limit=1
                $region105: #{tpu_custom_call.1} parent=103 // loop_pre_header
                  _
                $region106: #{tpu_custom_call.1} parent=103 // loop_header
                  %s462 = sphi 0, %s466
                  %p463 = scmp.ge.s32.totalorder %s462, 1
                  %s467 = sphi %s363, %s363
                  %s468 = sphi %s434, %s434
                $region107: #{tpu_custom_call.1} parent=103 // loop_header_branch
                  %465 = sbr.rel (%p463) target = $region111
                $region108: #{tpu_custom_call.1} parent=103 // loop_body
                  _
                $region109: #{tpu_custom_call.1} parent=103 // loop_footer
                  %s466 = sadd.s32 1, %s462
                $region110: #{tpu_custom_call.1} parent=103 // loop_footer_branch
                  %461 = sbr.rel target = $region106
                $region111: #{tpu_custom_call.1} parent=103 // loop_exit
                  _
                %s470 = ssub.s32 16, 1
                loop: start=0, step=1, limit=1
                $region112: #{tpu_custom_call.1} parent=103 // loop_pre_header
                  _
                $region113: #{tpu_custom_call.1} parent=103 // loop_header
                  %s472 = sphi 0, %s476
                  %p473 = scmp.ge.s32.totalorder %s472, 1
                  %s477 = sphi %s363, %s363
                  %s478 = sphi %s434, %s434
                $region114: #{tpu_custom_call.1} parent=103 // loop_header_branch
                  %475 = sbr.rel (%p473) target = $region118
                $region115: #{tpu_custom_call.1} parent=103 // loop_body
                  %v479 = vld [vmem:[%s477] sm:%s470]
                  %480 = vst [vmem:[%s478] sm:%s470] %v479
                  %v481 = vld [vmem:[%s477 + $0x4] sm:%s470]
                  %482 = vst [vmem:[%s478 + $0x8] sm:%s470] %v481
                  %v483 = vld [vmem:[%s477 + $0x8] sm:%s470]
                  %484 = vst [vmem:[%s478 + $0x10] sm:%s470] %v483
                  %v485 = vld [vmem:[%s477 + $0xc] sm:%s470]
                  %486 = vst [vmem:[%s478 + $0x18] sm:%s470] %v485
                $region116: #{tpu_custom_call.1} parent=103 // loop_footer
                  %s476 = sadd.s32 1, %s472
                $region117: #{tpu_custom_call.1} parent=103 // loop_footer_branch
                  %471 = sbr.rel target = $region113
                $region118: #{tpu_custom_call.1} parent=103 // loop_exit
                  _
              $region104: #{tpu_custom_call.1} parent=88 // pred_fallthru
                _
            $region89: #{tpu_custom_call.1} parent=84 // pred_fallthru
              _
            // Predicated region
            $region90: #{tpu_custom_call.1} parent=84 // pred_check
              _
            $region91: #{tpu_custom_call.1} parent=84 // pred_check_branch
              %440 = sbr.rel (0) target = $region93
            $region92: #{tpu_custom_call.1} parent=84 // pred_region
              %s442 = ssub.s32 16, 1
              loop: start=0, step=1, limit=1
              $region94: #{tpu_custom_call.1} parent=92 // loop_pre_header
                _
              $region95: #{tpu_custom_call.1} parent=92 // loop_header
                %s444 = sphi 0, %s448
                %p445 = scmp.ge.s32.totalorder %s444, 1
                %s449 = sphi %s363, %s363
                %s450 = sphi %s434, %s434
              $region96: #{tpu_custom_call.1} parent=92 // loop_header_branch
                %447 = sbr.rel (%p445) target = $region100
              $region97: #{tpu_custom_call.1} parent=92 // loop_body
                %v451 = vld [vmem:[%s449] sm:%s442]
                %452 = vst [vmem:[%s450] sm:%s442] %v451
                %v453 = vld [vmem:[%s449 + $0x4] sm:%s442]
                %454 = vst [vmem:[%s450 + $0x8] sm:%s442] %v453
                %v455 = vld [vmem:[%s449 + $0x8] sm:%s442]
                %456 = vst [vmem:[%s450 + $0x10] sm:%s442] %v455
                %v457 = vld [vmem:[%s449 + $0xc] sm:%s442]
                %458 = vst [vmem:[%s450 + $0x18] sm:%s442] %v457
              $region98: #{tpu_custom_call.1} parent=92 // loop_footer
                %s448 = sadd.s32 1, %s444
              $region99: #{tpu_custom_call.1} parent=92 // loop_footer_branch
                %443 = sbr.rel target = $region95
              $region100: #{tpu_custom_call.1} parent=92 // loop_exit
                _
            $region93: #{tpu_custom_call.1} parent=84 // pred_fallthru
              _
          $region85: #{tpu_custom_call.1} parent=80 // pred_fallthru
            _
          %487 = vnop
        $region81: #{tpu_custom_call.1} parent=27 // pred_fallthru
          _
        // Predicated region
        $region119: #{tpu_custom_call.1} parent=27 // pred_check
          %p488 = pneg %p157
        $region120: #{tpu_custom_call.1} parent=27 // pred_check_branch
          %490 = sbr.rel (%p488) target = $region122
        $region121: #{tpu_custom_call.1} parent=27 // pred_region
          %s491 = smul.addr %s24, 8
          %s492 = sadd.s32 %s25, %s491
          %s493 = smul.addr %s492, 4
          %s494 = scalar_lea.vmem %s4, %s493
          // Predicated region
          $region123: #{tpu_custom_call.1} parent=121 // pred_check
            _
          $region124: #{tpu_custom_call.1} parent=121 // pred_check_branch
            %496 = sbr.rel (0) target = $region126
          $region125: #{tpu_custom_call.1} parent=121 // pred_region
            // Predicated region
            $region127: #{tpu_custom_call.1} parent=125 // pred_check
              _
            $region128: #{tpu_custom_call.1} parent=125 // pred_check_branch
              %498 = sbr.rel target = $region130
            $region129: #{tpu_custom_call.1} parent=125 // pred_region
              // Predicated region
              $region142: #{tpu_custom_call.1} parent=129 // pred_check
                _
              $region143: #{tpu_custom_call.1} parent=129 // pred_check_branch
                %520 = sbr.rel (0) target = $region145
              $region144: #{tpu_custom_call.1} parent=129 // pred_region
                loop: start=0, step=1, limit=1
                $region146: #{tpu_custom_call.1} parent=144 // loop_pre_header
                  _
                $region147: #{tpu_custom_call.1} parent=144 // loop_header
                  %s522 = sphi 0, %s526
                  %p523 = scmp.ge.s32.totalorder %s522, 1
                  %s527 = sphi %s367, %s367
                  %s528 = sphi %s494, %s494
                $region148: #{tpu_custom_call.1} parent=144 // loop_header_branch
                  %525 = sbr.rel (%p523) target = $region152
                $region149: #{tpu_custom_call.1} parent=144 // loop_body
                  _
                $region150: #{tpu_custom_call.1} parent=144 // loop_footer
                  %s526 = sadd.s32 1, %s522
                $region151: #{tpu_custom_call.1} parent=144 // loop_footer_branch
                  %521 = sbr.rel target = $region147
                $region152: #{tpu_custom_call.1} parent=144 // loop_exit
                  _
                %s530 = ssub.s32 16, 1
                loop: start=0, step=1, limit=1
                $region153: #{tpu_custom_call.1} parent=144 // loop_pre_header
                  _
                $region154: #{tpu_custom_call.1} parent=144 // loop_header
                  %s532 = sphi 0, %s536
                  %p533 = scmp.ge.s32.totalorder %s532, 1
                  %s537 = sphi %s367, %s367
                  %s538 = sphi %s494, %s494
                $region155: #{tpu_custom_call.1} parent=144 // loop_header_branch
                  %535 = sbr.rel (%p533) target = $region159
                $region156: #{tpu_custom_call.1} parent=144 // loop_body
                  %v539 = vld [vmem:[%s537] sm:%s530]
                  %540 = vst [vmem:[%s538] sm:%s530] %v539
                  %v541 = vld [vmem:[%s537 + $0x4] sm:%s530]
                  %542 = vst [vmem:[%s538 + $0x8] sm:%s530] %v541
                  %v543 = vld [vmem:[%s537 + $0x8] sm:%s530]
                  %544 = vst [vmem:[%s538 + $0x10] sm:%s530] %v543
                  %v545 = vld [vmem:[%s537 + $0xc] sm:%s530]
                  %546 = vst [vmem:[%s538 + $0x18] sm:%s530] %v545
                $region157: #{tpu_custom_call.1} parent=144 // loop_footer
                  %s536 = sadd.s32 1, %s532
                $region158: #{tpu_custom_call.1} parent=144 // loop_footer_branch
                  %531 = sbr.rel target = $region154
                $region159: #{tpu_custom_call.1} parent=144 // loop_exit
                  _
              $region145: #{tpu_custom_call.1} parent=129 // pred_fallthru
                _
            $region130: #{tpu_custom_call.1} parent=125 // pred_fallthru
              _
            // Predicated region
            $region131: #{tpu_custom_call.1} parent=125 // pred_check
              _
            $region132: #{tpu_custom_call.1} parent=125 // pred_check_branch
              %500 = sbr.rel (0) target = $region134
            $region133: #{tpu_custom_call.1} parent=125 // pred_region
              %s502 = ssub.s32 16, 1
              loop: start=0, step=1, limit=1
              $region135: #{tpu_custom_call.1} parent=133 // loop_pre_header
                _
              $region136: #{tpu_custom_call.1} parent=133 // loop_header
                %s504 = sphi 0, %s508
                %p505 = scmp.ge.s32.totalorder %s504, 1
                %s509 = sphi %s367, %s367
                %s510 = sphi %s494, %s494
              $region137: #{tpu_custom_call.1} parent=133 // loop_header_branch
                %507 = sbr.rel (%p505) target = $region141
              $region138: #{tpu_custom_call.1} parent=133 // loop_body
                %v511 = vld [vmem:[%s509] sm:%s502]
                %512 = vst [vmem:[%s510] sm:%s502] %v511
                %v513 = vld [vmem:[%s509 + $0x4] sm:%s502]
                %514 = vst [vmem:[%s510 + $0x8] sm:%s502] %v513
                %v515 = vld [vmem:[%s509 + $0x8] sm:%s502]
                %516 = vst [vmem:[%s510 + $0x10] sm:%s502] %v515
                %v517 = vld [vmem:[%s509 + $0xc] sm:%s502]
                %518 = vst [vmem:[%s510 + $0x18] sm:%s502] %v517
              $region139: #{tpu_custom_call.1} parent=133 // loop_footer
                %s508 = sadd.s32 1, %s504
              $region140: #{tpu_custom_call.1} parent=133 // loop_footer_branch
                %503 = sbr.rel target = $region136
              $region141: #{tpu_custom_call.1} parent=133 // loop_exit
                _
            $region134: #{tpu_custom_call.1} parent=125 // pred_fallthru
              _
          $region126: #{tpu_custom_call.1} parent=121 // pred_fallthru
            _
          %547 = vnop
        $region122: #{tpu_custom_call.1} parent=27 // pred_fallthru
          _
      $region28: #{tpu_custom_call.1} parent=5 // pred_fallthru
        _
      %p548 = scmp.le.s32.totalorder 2, %s15
      // Predicated region
      $region160: #{tpu_custom_call.1} parent=5 // pred_check
        %p549 = pneg %p548
      $region161: #{tpu_custom_call.1} parent=5 // pred_check_branch
        %551 = sbr.rel (%p549) target = $region163
      $region162: #{tpu_custom_call.1} parent=5 // pred_region
        %s552 = ssub.s32 %s15, 2
        // Predicated region
        $region164: #{tpu_custom_call.1} parent=162 // pred_check
          %p553 = pneg %p107
        $region165: #{tpu_custom_call.1} parent=162 // pred_check_branch
          %555 = sbr.rel (%p553) target = $region167
        $region166: #{tpu_custom_call.1} parent=162 // pred_region
          %s556 = sand.u32 %s92, 1
          %s557 = sand.u32 %s92, 1
          %s558 = smul.addr %s557, 16
          %s559 = scalar_lea.vmem [#allocation6], %s558
        $region167: #{tpu_custom_call.1} parent=162 // pred_fallthru
          _
        // Predicated region
        $region168: #{tpu_custom_call.1} parent=162 // pred_check
          %p560 = pneg %p135
        $region169: #{tpu_custom_call.1} parent=162 // pred_check_branch
          %562 = sbr.rel (%p560) target = $region171
        $region170: #{tpu_custom_call.1} parent=162 // pred_region
          %s563 = sand.u32 %s120, 1
          %s564 = sand.u32 %s120, 1
          %s565 = smul.addr %s564, 16
          %s566 = scalar_lea.vmem [#allocation7], %s565
        $region171: #{tpu_custom_call.1} parent=162 // pred_fallthru
          _
        // Predicated region
        $region172: #{tpu_custom_call.1} parent=162 // pred_check
          %p567 = pneg %p163
        $region173: #{tpu_custom_call.1} parent=162 // pred_check_branch
          %569 = sbr.rel (%p567) target = $region175
        $region174: #{tpu_custom_call.1} parent=162 // pred_region
          %s570 = sand.u32 %s148, 1
          %s571 = sand.u32 %s148, 1
          %s572 = smul.addr %s571, 16
          %s573 = scalar_lea.vmem [#allocation8], %s572
        $region175: #{tpu_custom_call.1} parent=162 // pred_fallthru
          _
      $region163: #{tpu_custom_call.1} parent=5 // pred_fallthru
        _
    $region6: #{tpu_custom_call.1} parent=1 // loop_footer
      %s19 = sadd.s32 1, %s15
    $region7: #{tpu_custom_call.1} parent=1 // loop_footer_branch
      %14 = sbr.rel target = $region3
    $region8: #{tpu_custom_call.1} parent=1 // loop_exit
      _
    %574 = vsyncpa [#allocation3], 1
    %s575 = scalar_lea.sflag [#allocation3], 1
    %576 = vsyncpa %s575, 1
    %577 = vsyncpa [#allocation5], 1

</llo_original>
